<compile_context>
chip_gen: v6e
topology: v6e:2x2x1
jax: 0.10.0
libtpu: 0.0.40
codegen_flags: <defaults>
</compile_context>

<pallas_src>
import jax
import jax.numpy as jnp
from jax.experimental import pallas as pl
from jax.experimental.pallas import tpu as pltpu


def _round_up(x, m):
    return ((x + m - 1) // m) * m


def _pick_tile(n, cap):
    """Largest multiple of 128 that divides n and is <= cap (n is a multiple of 128)."""
    cap = max(128, min(cap, n))
    d = (cap // 128) * 128
    while d > 128 and n % d != 0:
        d -= 128
    return max(d, 128)


def _vmem_limit_bytes():
    """Per-generation scoped-VMEM budget (~96-100 MiB v5e/v6e, ~48 MiB v7x)."""
    cap = 64 * 1024 * 1024
    try:
        info = pltpu.get_tpu_info()
        cap = int(getattr(info, "vmem_capacity_bytes", cap))
    except Exception:
        pass
    return min((cap * 3) // 4, 100 * 1024 * 1024)


# --------------------- path 1: A_hat resident in VMEM (fused) ---------------------

def _forward_resident(a_p, x_p, pool_p, w_eff, c_eff, w_conv, b_conv,
                      w_post, b_post, w_read, b_read, nlayer, vmem_limit):
    n_pad, nfeat = x_p.shape
    nhid = w_conv.shape[-1]
    G = pool_p.shape[0]
    nclass = w_read.shape[1]
    bf16, f32 = jnp.bfloat16, jnp.float32

    def kernel(a_ref, x_in_ref, w0_ref, c0_ref, w_ref, b_ref, pool_ref,
               wpost_ref, bpost_ref, wread_ref, bread_ref, out_ref, x_ref):
        l = pl.program_id(0)

        # H_l = X_l @ W_l (once per layer; bf16-rounded once), then
        # X_{l+1} = ReLU(A_hat @ H_l + b_l) into the VMEM-resident activation.
        @pl.when(l == 0)
        def _first_layer():
            # `pre` Linear folded into conv layer 0: H_1 = X_in @ (W_pre W_1) + b_pre W_1
            h = (jnp.dot(x_in_ref[...], w0_ref[...],
                         preferred_element_type=jnp.float32) + c0_ref[...]).astype(bf16)
            y = jnp.dot(a_ref[...], h, preferred_element_type=jnp.float32) + b_ref[0]
            x_ref[...] = jnp.maximum(y, 0.0).astype(x_ref.dtype)

        @pl.when(l > 0)
        def _other_layers():
            h = jnp.dot(x_ref[...], w_ref[0],
                        preferred_element_type=jnp.float32).astype(bf16)
            y = jnp.dot(a_ref[...], h, preferred_element_type=jnp.float32) + b_ref[0]
            x_ref[...] = jnp.maximum(y, 0.0).astype(x_ref.dtype)

        # Fused head: global_add_pool -> post Linear+ReLU -> readout -> log_softmax.
        @pl.when(l == pl.num_programs(0) - 1)
        def _head():
            pooled = jnp.dot(pool_ref[...], x_ref[...],
                             preferred_element_type=jnp.float32)
            hh = jnp.maximum(jnp.dot(pooled, wpost_ref[...],
                                     preferred_element_type=jnp.float32) + bpost_ref[...], 0.0)
            logits = jnp.dot(hh, wread_ref[...],
                             preferred_element_type=jnp.float32) + bread_ref[...]
            z = logits - jnp.max(logits, axis=1, keepdims=True)
            out_ref[...] = z - jnp.log(jnp.sum(jnp.exp(z), axis=1, keepdims=True))

    const = lambda l: (0, 0)
    return pl.pallas_call(
        kernel,
        out_shape=jax.ShapeDtypeStruct((G, nclass), f32),
        grid=(nlayer,),
        in_specs=[
            pl.BlockSpec((n_pad, n_pad), const),                 # A_hat (resident)
            pl.BlockSpec((n_pad, nfeat), const),                 # X_in (resident)
            pl.BlockSpec((nfeat, nhid), const),                  # W_eff (pre folded)
            pl.BlockSpec((1, nhid), const),                      # c_eff
            pl.BlockSpec((1, nhid, nhid), lambda l: (l, 0, 0)),  # W_conv[l]
            pl.BlockSpec((1, 1, nhid), lambda l: (l, 0, 0)),     # b_conv[l]
            pl.BlockSpec((G, n_pad), const),                     # pool (resident)
            pl.BlockSpec((nhid, nhid), const),                   # W_post
            pl.BlockSpec((1, nhid), const),                      # b_post
            pl.BlockSpec((nhid, nclass), const),                 # W_read
            pl.BlockSpec((1, nclass), const),                    # b_read
        ],
        out_specs=pl.BlockSpec((G, nclass), const),
        scratch_shapes=[pltpu.VMEM((n_pad, nhid), bf16)],        # layer activation X_l
        compiler_params=pltpu.CompilerParams(
            dimension_semantics=("arbitrary",),                  # layers are sequential
            vmem_limit_bytes=vmem_limit),
    )(a_p, x_p, w_eff, c_eff, w_conv, b_conv, pool_p,
      w_post, b_post, w_read, b_read)


# --------------------- path 2: A_hat streamed from HBM (fallback) ---------------------

def _forward_streaming(a_p, x_p, pool_p, w_eff, c_eff, w_conv, b_conv,
                       w_post, b_post, w_read, b_read, nlayer,
                       tile_m, tile_k, vmem_limit):
    n_pad, _ = x_p.shape
    nhid = w_conv.shape[-1]
    G = pool_p.shape[0]
    nclass = w_read.shape[1]
    bf16, f32 = jnp.bfloat16, jnp.float32

    # Megacore occupancy: keep >= 2 row blocks when the graph is large enough.
    tm = _pick_tile(n_pad, min(tile_m, max(128, n_pad // 2)))
    tk = _pick_tile(n_pad, tile_k)

    def _fits(tm_, tk_):
        need = (2 * tm_ * tk_ * 2          # A tile, double buffered
                + 2 * n_pad * nhid * 2     # resident H
                + tm_ * nhid * 4           # f32 accumulator
                + 2 * tm_ * nhid * 2       # output block
                + (1 << 20))
        return need <= vmem_limit

    while not _fits(tm, tk) and tk > 128:
        tk = _pick_tile(n_pad, tk - 128)
    while not _fits(tm, tk) and tm > 128:
        tm = _pick_tile(n_pad, tm - 128)

    def cparams(sem):
        return pltpu.CompilerParams(dimension_semantics=sem,
                                    vmem_limit_bytes=vmem_limit)

    # --- H_l = X_l @ W_l (+ c): hoisted out of the A-streaming loop, once per layer ---
    def xw_kernel(x_ref, w_ref, c_ref, h_ref):
        h_ref[...] = (jnp.dot(x_ref[...], w_ref[...],
                              preferred_element_type=jnp.float32)
                      + c_ref[...]).astype(h_ref.dtype)

    def xw_call(x_l, w_l, c_l):
        nin = x_l.shape[1]
        return pl.pallas_call(
            xw_kernel,
            out_shape=jax.ShapeDtypeStruct((n_pad, nhid), bf16),
            grid=(n_pad // tm,),
            in_specs=[pl.BlockSpec((tm, nin), lambda i: (i, 0)),
                      pl.BlockSpec((nin, nhid), lambda i: (0, 0)),
                      pl.BlockSpec((1, nhid), lambda i: (0, 0))],
            out_specs=pl.BlockSpec((tm, nhid), lambda i: (i, 0)),
            compiler_params=cparams(("parallel",)),
        )(x_l, w_l, c_l)

    # --- X_out = ReLU(A_hat @ H + b): A streamed in (tm, tk) tiles, f32 accumulator ---
    def agg_kernel(a_ref, h_ref, b_ref, out_ref, acc_ref):
        k = pl.program_id(1)

        @pl.when(k == 0)
        def _init():
            acc_ref[...] = jnp.zeros_like(acc_ref)

        start = pl.multiple_of(k * tk, 128)
        acc_ref[...] += jnp.dot(a_ref[...], h_ref[pl.ds(start, tk), :],
                                preferred_element_type=jnp.float32)

        @pl.when(k == pl.num_programs(1) - 1)
        def _finalize():
            out_ref[...] = jnp.maximum(acc_ref[...] + b_ref[...], 0.0).astype(out_ref.dtype)

    agg_call = pl.pallas_call(
        agg_kernel,
        out_shape=jax.ShapeDtypeStruct((n_pad, nhid), bf16),
        grid=(n_pad // tm, n_pad // tk),
        in_specs=[pl.BlockSpec((tm, tk), lambda i, k: (i, k)),        # A tile (streamed)
                  pl.BlockSpec((n_pad, nhid), lambda i, k: (0, 0)),   # H (VMEM resident)
                  pl.BlockSpec((1, nhid), lambda i, k: (0, 0))],      # b (resident)
        out_specs=pl.BlockSpec((tm, nhid), lambda i, k: (i, 0)),
        scratch_shapes=[pltpu.VMEM((tm, nhid), f32)],
        compiler_params=cparams(("parallel", "arbitrary")),
    )

    zeros_c = jnp.zeros((1, nhid), f32)
    h = xw_call(x_p, w_eff, c_eff)                 # `pre` folded into layer 0
    x_l = agg_call(a_p, h, b_conv[0])
    for l in range(1, nlayer):
        h = xw_call(x_l, w_conv[l], zeros_c)
        x_l = agg_call(a_p, h, b_conv[l])

    # --- pooling (tiled over the N reduction) + post + readout + log_softmax ---
    # TODO(synk): fuse the pooling into the last agg_call's finalize as per-row-block
    #             partial (G, nhid) outputs to skip this extra pass over X.
    def head_kernel(pool_ref, x_ref, wpost_ref, bpost_ref, wread_ref, bread_ref,
                    out_ref, pooled_acc):
        k = pl.program_id(0)

        @pl.when(k == 0)
        def _init():
            pooled_acc[...] = jnp.zeros_like(pooled_acc)

        pooled_acc[...] += jnp.dot(pool_ref[...], x_ref[...],
                                   preferred_element_type=jnp.float32)

        @pl.when(k == pl.num_programs(0) - 1)
        def _finalize():
            hh = jnp.maximum(jnp.dot(pooled_acc[...], wpost_ref[...],
                                     preferred_element_type=jnp.float32) + bpost_ref[...], 0.0)
            logits = jnp.dot(hh, wread_ref[...],
                             preferred_element_type=jnp.float32) + bread_ref[...]
            z = logits - jnp.max(logits, axis=1, keepdims=True)
            out_ref[...] = z - jnp.log(jnp.sum(jnp.exp(z), axis=1, keepdims=True))

    return pl.pallas_call(
        head_kernel,
        out_shape=jax.ShapeDtypeStruct((G, nclass), f32),
        grid=(n_pad // tk,),
        in_specs=[pl.BlockSpec((G, tk), lambda k: (0, k)),
                  pl.BlockSpec((tk, nhid), lambda k: (k, 0)),
                  pl.BlockSpec((nhid, nhid), lambda k: (0, 0)),
                  pl.BlockSpec((1, nhid), lambda k: (0, 0)),
                  pl.BlockSpec((nhid, nclass), lambda k: (0, 0)),
                  pl.BlockSpec((1, nclass), lambda k: (0, 0))],
        out_specs=pl.BlockSpec((G, nclass), lambda k: (0, 0)),
        scratch_shapes=[pltpu.VMEM((G, nhid), f32)],
        compiler_params=cparams(("arbitrary",)),
    )(pool_p, x_l, w_post, b_post, w_read, b_read)


# ------------------------------ wrapper ------------------------------

def gcn_forward(x, a_hat, pool, params, *, tile_m=1024, tile_k=2048,
                force_streaming=False):
    """x: (N, nfeat) f32, a_hat: (N, N) f32, pool: (G, N) f32 one-hot^T."""
    N, nfeat = x.shape
    nhid = params["w_conv"].shape[-1]
    G = pool.shape[0]
    nlayer = params["w_conv"].shape[0]
    bf16, f32 = jnp.bfloat16, jnp.float32

    # Pad ONLY to the 128-lane boundary (no lcm blow-up).  Zero padding is exact:
    # padded A rows/cols and padded pool columns are zero, so padded "nodes" never
    # affect real nodes or the per-graph sums (padded activation rows do become
    # ReLU(b_l), but nothing ever reads them directly).
    n_pad = _round_up(N, 128)
    x_p = jnp.zeros((n_pad, nfeat), bf16).at[:N].set(x.astype(bf16))
    a_p = jnp.zeros((n_pad, n_pad), bf16).at[:N, :N].set(a_hat.astype(bf16))
    pool_p = jnp.zeros((G, n_pad), bf16).at[:, :N].set(pool.astype(bf16))

    # Fold the `pre` Linear into conv layer 0 (no ReLU between them):
    #   H_1 = (X @ W_pre + b_pre) @ W_1 = X @ (W_pre W_1) + b_pre W_1
    w_eff = (params["w_pre"] @ params["w_conv"][0]).astype(bf16)     # (nfeat, nhid)
    c_eff = (params["b_pre"] @ params["w_conv"][0]).astype(f32)      # (1, nhid)
    w_conv = params["w_conv"].astype(bf16)                           # (nlayer, nhid, nhid)
    b_conv = params["b_conv"].astype(f32)                            # (nlayer, 1, nhid)
    w_post = params["w_post"].astype(f32)
    b_post = params["b_post"].astype(f32)
    w_read = params["w_read"].astype(f32)
    b_read = params["b_read"].astype(f32)

    vmem_limit = _vmem_limit_bytes()

    # Resident-A budget (conservatively assume double-buffered inputs).
    resident_bytes = (2 * n_pad * n_pad * 2
                      + 2 * n_pad * nfeat * 2
                      + 2 * G * n_pad * 2
                      + n_pad * nhid * 2
                      + (2 << 20))

    if (not force_streaming) and resident_bytes <= vmem_limit:
        return _forward_resident(a_p, x_p, pool_p, w_eff, c_eff, w_conv, b_conv,
                                 w_post, b_post, w_read, b_read, nlayer, vmem_limit)
    return _forward_streaming(a_p, x_p, pool_p, w_eff, c_eff, w_conv, b_conv,
                              w_post, b_post, w_read, b_read, nlayer,
                              tile_m, tile_k, vmem_limit)


# ------------------------- plain-JAX glue / setup -------------------------

def build_normalized_adjacency(edge_index, num_nodes):
    """Dense D^{-1/2}(A+I)D^{-1/2}, matching PyG GCNConv's gcn_norm."""
    src, dst = edge_index[0], edge_index[1]
    a = jnp.zeros((num_nodes, num_nodes), jnp.float32).at[dst, src].add(1.0)
    diag = jnp.diagonal(a)
    a = a + jnp.diag(jnp.where(diag == 0.0, 1.0, 0.0))
    deg = jnp.sum(a, axis=1)
    d_inv_sqrt = jnp.where(deg > 0.0, 1.0 / jnp.sqrt(deg), 0.0)
    return d_inv_sqrt[:, None] * a * d_inv_sqrt[None, :]


def init_params(key, nfeat, nhid, nclass, nlayer):
    """Deterministic synthetic init (shapes match the PyTorch module)."""
    ks = jax.random.split(key, 10)

    def w(k, fan_in, fan_out):
        return jax.random.normal(k, (fan_in, fan_out), jnp.float32) / jnp.sqrt(fan_in)

    w_conv = jnp.stack([w(ks[2 + l], nhid, nhid) for l in range(nlayer)], axis=0)
    b_conv = jnp.zeros((nlayer, 1, nhid), jnp.float32)
    return {
        "w_pre": w(ks[0], nfeat, nhid),
        "b_pre": jnp.zeros((1, nhid), jnp.float32),
        "w_conv": w_conv,              # (nlayer, nhid, nhid)
        "b_conv": b_conv,              # (nlayer, 1, nhid)
        "w_post": w(ks[8], nhid, nhid),
        "b_post": jnp.zeros((1, nhid), jnp.float32),
        "w_read": w(ks[9], nhid, nclass),
        "b_read": jnp.zeros((1, nclass), jnp.float32),
    }


def reference_forward(x, a_hat, pool, params):
    """Pure-JAX f32 reference of the same forward pass (for a sanity check)."""
    h = x @ params["w_pre"] + params["b_pre"]
    for l in range(params["w_conv"].shape[0]):
        h = jnp.maximum(a_hat @ (h @ params["w_conv"][l]) + params["b_conv"][l], 0.0)
    pooled = pool @ h
    h = jnp.maximum(pooled @ params["w_post"] + params["b_post"], 0.0)
    logits = h @ params["w_read"] + params["b_read"]
    return jax.nn.log_softmax(logits, axis=1)


if __name__ == "__main__":
    nfeat, nhid, nclass, nlayer = 16, 32, 4, 2
    num_nodes, num_graphs = 8, 2

    key = jax.random.PRNGKey(0)
    kx, kp = jax.random.split(key)

    # data.x
    x = jax.random.normal(kx, (num_nodes, nfeat), jnp.float32)

    # data.edge_index: two 4-node rings (bidirectional edges), shape (2, 16)
    def ring(offset, n=4):
        fwd = [(offset + i, offset + (i + 1) % n) for i in range(n)]
        return fwd + [(d, s) for (s, d) in fwd]

    edges = ring(0) + ring(4)
    edge_index = jnp.array(list(zip(*edges)), dtype=jnp.int32)   # (2, 16)

    # data.batch
    batch = jnp.array([0, 0, 0, 0, 1, 1, 1, 1], dtype=jnp.int32)

    a_hat = build_normalized_adjacency(edge_index, num_nodes)          # (N, N)
    pool = jax.nn.one_hot(batch, num_graphs, dtype=jnp.float32).T      # (G, N)
    params = init_params(kp, nfeat, nhid, nclass, nlayer)

    # Dropout with training=False is the identity -> omitted.
    out_res = gcn_forward(x, a_hat, pool, params)                       # resident-A path
    out_str = gcn_forward(x, a_hat, pool, params, force_streaming=True) # streaming path
    jax.block_until_ready((out_res, out_str))

    ref = reference_forward(x, a_hat, pool, params)
    for out in (out_res, out_str):
        assert out.shape == (num_graphs, nclass)
        assert bool(jnp.all(jnp.isfinite(out)))
        # rows of log_softmax must exp-sum to 1
        assert bool(jnp.allclose(jnp.sum(jnp.exp(out), axis=1), 1.0, atol=1e-5))
        # generous tolerance: A_hat / activations run through the MXU in bf16
        assert bool(jnp.max(jnp.abs(out - ref)) < 1e-1)
    print("KERNEL_OK")
</pallas_src>

<mosaic_0001>
module attributes {stable_mosaic.version = 11 : i64} {
  func.func @kernel(%arg0: i32, %arg1: memref<128x128xbf16, #tpu.memory_space<vmem>>, %arg2: memref<128x16xbf16, #tpu.memory_space<vmem>>, %arg3: memref<16x32xbf16, #tpu.memory_space<vmem>>, %arg4: memref<1x32xf32, #tpu.memory_space<vmem>>, %arg5: memref<1x32x32xbf16, #tpu.memory_space<vmem>>, %arg6: memref<1x1x32xf32, #tpu.memory_space<vmem>>, %arg7: memref<2x128xbf16, #tpu.memory_space<vmem>>, %arg8: memref<32x32xf32, #tpu.memory_space<vmem>>, %arg9: memref<1x32xf32, #tpu.memory_space<vmem>>, %arg10: memref<32x4xf32, #tpu.memory_space<vmem>>, %arg11: memref<1x4xf32, #tpu.memory_space<vmem>>, %arg12: memref<2x4xf32, #tpu.memory_space<vmem>>, %arg13: memref<128x32xbf16, #tpu.memory_space<vmem>>) attributes {dimension_semantics = [#tpu.dimension_semantics<arbitrary>], iteration_bounds = array<i64: 2>, scalar_prefetch = 0 : i64, scratch_operands = 1 : i64, tpu.core_type = #tpu.core_type<tc>, window_params = [{pipeline_mode = #tpu.pipeline_mode<synchronous>, transform_indices = @transform_0, window_bounds = array<i64: 128, 128>}, {pipeline_mode = #tpu.pipeline_mode<synchronous>, transform_indices = @transform_1, window_bounds = array<i64: 128, 16>}, {pipeline_mode = #tpu.pipeline_mode<synchronous>, transform_indices = @transform_2, window_bounds = array<i64: 16, 32>}, {pipeline_mode = #tpu.pipeline_mode<synchronous>, transform_indices = @transform_3, window_bounds = array<i64: 1, 32>}, {transform_indices = @transform_4, window_bounds = array<i64: 1, 32, 32>}, {transform_indices = @transform_5, window_bounds = array<i64: 1, 1, 32>}, {pipeline_mode = #tpu.pipeline_mode<synchronous>, transform_indices = @transform_6, window_bounds = array<i64: 2, 128>}, {pipeline_mode = #tpu.pipeline_mode<synchronous>, transform_indices = @transform_7, window_bounds = array<i64: 32, 32>}, {pipeline_mode = #tpu.pipeline_mode<synchronous>, transform_indices = @transform_8, window_bounds = array<i64: 1, 32>}, {pipeline_mode = #tpu.pipeline_mode<synchronous>, transform_indices = @transform_9, window_bounds = array<i64: 32, 4>}, {pipeline_mode = #tpu.pipeline_mode<synchronous>, transform_indices = @transform_10, window_bounds = array<i64: 1, 4>}, {pipeline_mode = #tpu.pipeline_mode<synchronous>, transform_indices = @transform_11, window_bounds = array<i64: 2, 4>}]} {
    %c0_i32 = arith.constant 0 : i32
    %0 = arith.cmpi eq, %arg0, %c0_i32 : i32
    %1 = arith.extui %0 : i1 to i32
    %c0_i32_0 = arith.constant 0 : i32
    %2 = arith.cmpi ne, %1, %c0_i32_0 : i32
    scf.if %2 {
      %c0 = arith.constant 0 : index
      %c0_4 = arith.constant 0 : index
      %9 = vector.load %arg2[%c0, %c0_4] : memref<128x16xbf16, #tpu.memory_space<vmem>>, vector<128x16xbf16>
      %c0_5 = arith.constant 0 : index
      %c0_6 = arith.constant 0 : index
      %10 = vector.load %arg3[%c0_5, %c0_6] : memref<16x32xbf16, #tpu.memory_space<vmem>>, vector<16x32xbf16>
      %cst = arith.constant dense<0.000000e+00> : vector<128x32xf32>
      %11 = tpu.matmul %9, %10, %cst {dimension_numbers = #tpu.dot_dimension_numbers<[1], [0], [0], [1], [0, 0, 1, 1], [], []>} : vector<128x16xbf16>, vector<16x32xbf16>, vector<128x32xf32> -> vector<128x32xf32>
      %c0_7 = arith.constant 0 : index
      %c0_8 = arith.constant 0 : index
      %12 = vector.load %arg4[%c0_7, %c0_8] : memref<1x32xf32, #tpu.memory_space<vmem>>, vector<1x32xf32>
      %13 = vector.broadcast %12 : vector<1x32xf32> to vector<128x32xf32>
      %14 = arith.addf %11, %13 : vector<128x32xf32>
      %15 = arith.truncf %14 : vector<128x32xf32> to vector<128x32xbf16>
      %c0_9 = arith.constant 0 : index
      %c0_10 = arith.constant 0 : index
      %16 = vector.load %arg1[%c0_9, %c0_10] : memref<128x128xbf16, #tpu.memory_space<vmem>>, vector<128x128xbf16>
      %cst_11 = arith.constant dense<0.000000e+00> : vector<128x32xf32>
      %17 = tpu.matmul %16, %15, %cst_11 {dimension_numbers = #tpu.dot_dimension_numbers<[1], [0], [0], [1], [0, 0, 1, 1], [], []>} : vector<128x128xbf16>, vector<128x32xbf16>, vector<128x32xf32> -> vector<128x32xf32>
      %c0_12 = arith.constant 0 : index
      %c0_13 = arith.constant 0 : index
      %c0_14 = arith.constant 0 : index
      %18 = vector.load %arg6[%c0_12, %c0_13, %c0_14] : memref<1x1x32xf32, #tpu.memory_space<vmem>>, vector<1x1x32xf32>
      %19 = vector.shape_cast %18 : vector<1x1x32xf32> to vector<1x32xf32>
      %20 = vector.broadcast %19 : vector<1x32xf32> to vector<128x32xf32>
      %21 = arith.addf %17, %20 : vector<128x32xf32>
      %cst_15 = arith.constant 0.000000e+00 : f32
      %22 = vector.broadcast %cst_15 : f32 to vector<128x32xf32>
      %23 = arith.maximumf %21, %22 : vector<128x32xf32>
      %24 = arith.truncf %23 : vector<128x32xf32> to vector<128x32xbf16>
      %c0_16 = arith.constant 0 : index
      %c0_17 = arith.constant 0 : index
      %25 = vector.load %arg13[%c0_16, %c0_17] : memref<128x32xbf16, #tpu.memory_space<vmem>>, vector<128x32xbf16>
      tpu.vector_store %arg13[%c0_16, %c0_17], %24 {strides = array<i32>} : memref<128x32xbf16, #tpu.memory_space<vmem>>, vector<128x32xbf16>,
    } else {
    }
    %c0_i32_1 = arith.constant 0 : i32
    %3 = arith.cmpi sgt, %arg0, %c0_i32_1 : i32
    %4 = arith.extui %3 : i1 to i32
    %c0_i32_2 = arith.constant 0 : i32
    %5 = arith.cmpi ne, %4, %c0_i32_2 : i32
    scf.if %5 {
      %c0 = arith.constant 0 : index
      %c0_4 = arith.constant 0 : index
      %9 = vector.load %arg13[%c0, %c0_4] : memref<128x32xbf16, #tpu.memory_space<vmem>>, vector<128x32xbf16>
      %c0_5 = arith.constant 0 : index
      %c0_6 = arith.constant 0 : index
      %c0_7 = arith.constant 0 : index
      %10 = vector.load %arg5[%c0_5, %c0_6, %c0_7] : memref<1x32x32xbf16, #tpu.memory_space<vmem>>, vector<1x32x32xbf16>
      %11 = vector.shape_cast %10 : vector<1x32x32xbf16> to vector<32x32xbf16>
      %cst = arith.constant dense<0.000000e+00> : vector<128x32xf32>
      %12 = tpu.matmul %9, %11, %cst {dimension_numbers = #tpu.dot_dimension_numbers<[1], [0], [0], [1], [0, 0, 1, 1], [], []>} : vector<128x32xbf16>, vector<32x32xbf16>, vector<128x32xf32> -> vector<128x32xf32>
      %13 = arith.truncf %12 : vector<128x32xf32> to vector<128x32xbf16>
      %c0_8 = arith.constant 0 : index
      %c0_9 = arith.constant 0 : index
      %14 = vector.load %arg1[%c0_8, %c0_9] : memref<128x128xbf16, #tpu.memory_space<vmem>>, vector<128x128xbf16>
      %cst_10 = arith.constant dense<0.000000e+00> : vector<128x32xf32>
      %15 = tpu.matmul %14, %13, %cst_10 {dimension_numbers = #tpu.dot_dimension_numbers<[1], [0], [0], [1], [0, 0, 1, 1], [], []>} : vector<128x128xbf16>, vector<128x32xbf16>, vector<128x32xf32> -> vector<128x32xf32>
      %c0_11 = arith.constant 0 : index
      %c0_12 = arith.constant 0 : index
      %c0_13 = arith.constant 0 : index
      %16 = vector.load %arg6[%c0_11, %c0_12, %c0_13] : memref<1x1x32xf32, #tpu.memory_space<vmem>>, vector<1x1x32xf32>
      %17 = vector.shape_cast %16 : vector<1x1x32xf32> to vector<1x32xf32>
      %18 = vector.broadcast %17 : vector<1x32xf32> to vector<128x32xf32>
      %19 = arith.addf %15, %18 : vector<128x32xf32>
      %cst_14 = arith.constant 0.000000e+00 : f32
      %20 = vector.broadcast %cst_14 : f32 to vector<128x32xf32>
      %21 = arith.maximumf %19, %20 : vector<128x32xf32>
      %22 = arith.truncf %21 : vector<128x32xf32> to vector<128x32xbf16>
      %c0_15 = arith.constant 0 : index
      %c0_16 = arith.constant 0 : index
      %23 = vector.load %arg13[%c0_15, %c0_16] : memref<128x32xbf16, #tpu.memory_space<vmem>>, vector<128x32xbf16>
      tpu.vector_store %arg13[%c0_15, %c0_16], %22 {strides = array<i32>} : memref<128x32xbf16, #tpu.memory_space<vmem>>, vector<128x32xbf16>,
    } else {
    }
    %c1_i32 = arith.constant 1 : i32
    %6 = arith.cmpi eq, %arg0, %c1_i32 : i32
    %7 = arith.extui %6 : i1 to i32
    %c0_i32_3 = arith.constant 0 : i32
    %8 = arith.cmpi ne, %7, %c0_i32_3 : i32
    scf.if %8 {
      %c0 = arith.constant 0 : index
      %c0_4 = arith.constant 0 : index
      %9 = vector.load %arg7[%c0, %c0_4] : memref<2x128xbf16, #tpu.memory_space<vmem>>, vector<2x128xbf16>
      %c0_5 = arith.constant 0 : index
      %c0_6 = arith.constant 0 : index
      %10 = vector.load %arg13[%c0_5, %c0_6] : memref<128x32xbf16, #tpu.memory_space<vmem>>, vector<128x32xbf16>
      %cst = arith.constant dense<0.000000e+00> : vector<2x32xf32>
      %11 = tpu.matmul %9, %10, %cst {dimension_numbers = #tpu.dot_dimension_numbers<[1], [0], [0], [1], [0, 0, 1, 1], [], []>} : vector<2x128xbf16>, vector<128x32xbf16>, vector<2x32xf32> -> vector<2x32xf32>
      %c0_7 = arith.constant 0 : index
      %c0_8 = arith.constant 0 : index
      %12 = vector.load %arg8[%c0_7, %c0_8] : memref<32x32xf32, #tpu.memory_space<vmem>>, vector<32x32xf32>
      %cst_9 = arith.constant dense<0.000000e+00> : vector<2x32xf32>
      %13 = tpu.matmul %11, %12, %cst_9 {dimension_numbers = #tpu.dot_dimension_numbers<[1], [0], [0], [1], [0, 0, 1, 1], [], []>} : vector<2x32xf32>, vector<32x32xf32>, vector<2x32xf32> -> vector<2x32xf32>
      %c0_10 = arith.constant 0 : index
      %c0_11 = arith.constant 0 : index
      %14 = vector.load %arg9[%c0_10, %c0_11] : memref<1x32xf32, #tpu.memory_space<vmem>>, vector<1x32xf32>
      %15 = vector.broadcast %14 : vector<1x32xf32> to vector<2x32xf32>
      %16 = arith.addf %13, %15 : vector<2x32xf32>
      %cst_12 = arith.constant 0.000000e+00 : f32
      %17 = vector.broadcast %cst_12 : f32 to vector<2x32xf32>
      %18 = arith.maximumf %16, %17 : vector<2x32xf32>
      %c0_13 = arith.constant 0 : index
      %c0_14 = arith.constant 0 : index
      %19 = vector.load %arg10[%c0_13, %c0_14] : memref<32x4xf32, #tpu.memory_space<vmem>>, vector<32x4xf32>
      %cst_15 = arith.constant dense<0.000000e+00> : vector<2x4xf32>
      %20 = tpu.matmul %18, %19, %cst_15 {dimension_numbers = #tpu.dot_dimension_numbers<[1], [0], [0], [1], [0, 0, 1, 1], [], []>} : vector<2x32xf32>, vector<32x4xf32>, vector<2x4xf32> -> vector<2x4xf32>
      %c0_16 = arith.constant 0 : index
      %c0_17 = arith.constant 0 : index
      %21 = vector.load %arg11[%c0_16, %c0_17] : memref<1x4xf32, #tpu.memory_space<vmem>>, vector<1x4xf32>
      %22 = vector.broadcast %21 : vector<1x4xf32> to vector<2x4xf32>
      %23 = arith.addf %20, %22 : vector<2x4xf32>
      %cst_18 = arith.constant dense<0xFF800000> : vector<2xf32>
      %24 = vector.multi_reduction <maximumf>, %23, %cst_18 [1] : vector<2x4xf32> to vector<2xf32>
      %25 = vector.shape_cast %24 : vector<2xf32> to vector<2x1xf32>
      %26 = vector.broadcast %25 : vector<2x1xf32> to vector<2x4xf32>
      %27 = arith.subf %23, %26 : vector<2x4xf32>
      %28 = math.exp %27 : vector<2x4xf32>
      %cst_19 = arith.constant dense<0.000000e+00> : vector<2xf32>
      %29 = vector.multi_reduction <add>, %28, %cst_19 [1] : vector<2x4xf32> to vector<2xf32>
      %30 = vector.shape_cast %29 : vector<2xf32> to vector<2x1xf32>
      %31 = math.log %30 : vector<2x1xf32>
      %32 = vector.broadcast %31 : vector<2x1xf32> to vector<2x4xf32>
      %33 = arith.subf %27, %32 : vector<2x4xf32>
      %c0_20 = arith.constant 0 : index
      %c0_21 = arith.constant 0 : index
      %34 = vector.load %arg12[%c0_20, %c0_21] : memref<2x4xf32, #tpu.memory_space<vmem>>, vector<2x4xf32>
      tpu.vector_store %arg12[%c0_20, %c0_21], %33 {strides = array<i32>} : memref<2x4xf32, #tpu.memory_space<vmem>>, vector<2x4xf32>,
    } else {
    }
    return
  }
  func.func @transform_0(%arg0: i32) -> (i32, i32) {
    %c0_i32 = arith.constant 0 : i32
    %c0_i32_0 = arith.constant 0 : i32
    %c0_i32_1 = arith.constant 0 : i32
    return %c0_i32, %c0_i32_0 : i32, i32
  }
  func.func @transform_1(%arg0: i32) -> (i32, i32) {
    %c0_i32 = arith.constant 0 : i32
    %c0_i32_0 = arith.constant 0 : i32
    %c0_i32_1 = arith.constant 0 : i32
    return %c0_i32, %c0_i32_0 : i32, i32
  }
  func.func @transform_2(%arg0: i32) -> (i32, i32) {
    %c0_i32 = arith.constant 0 : i32
    %c0_i32_0 = arith.constant 0 : i32
    %c0_i32_1 = arith.constant 0 : i32
    return %c0_i32, %c0_i32_0 : i32, i32
  }
  func.func @transform_3(%arg0: i32) -> (i32, i32) {
    %c0_i32 = arith.constant 0 : i32
    %c0_i32_0 = arith.constant 0 : i32
    %c0_i32_1 = arith.constant 0 : i32
    return %c0_i32, %c0_i32_0 : i32, i32
  }
  func.func @transform_4(%arg0: i32) -> (i32, i32, i32) {
    %c0_i32 = arith.constant 0 : i32
    %c0_i32_0 = arith.constant 0 : i32
    %c0_i32_1 = arith.constant 0 : i32
    return %arg0, %c0_i32, %c0_i32_0 : i32, i32, i32
  }
  func.func @transform_5(%arg0: i32) -> (i32, i32, i32) {
    %c0_i32 = arith.constant 0 : i32
    %c0_i32_0 = arith.constant 0 : i32
    %c0_i32_1 = arith.constant 0 : i32
    return %arg0, %c0_i32, %c0_i32_0 : i32, i32, i32
  }
  func.func @transform_6(%arg0: i32) -> (i32, i32) {
    %c0_i32 = arith.constant 0 : i32
    %c0_i32_0 = arith.constant 0 : i32
    %c0_i32_1 = arith.constant 0 : i32
    return %c0_i32, %c0_i32_0 : i32, i32
  }
  func.func @transform_7(%arg0: i32) -> (i32, i32) {
    %c0_i32 = arith.constant 0 : i32
    %c0_i32_0 = arith.constant 0 : i32
    %c0_i32_1 = arith.constant 0 : i32
    return %c0_i32, %c0_i32_0 : i32, i32
  }
  func.func @transform_8(%arg0: i32) -> (i32, i32) {
    %c0_i32 = arith.constant 0 : i32
    %c0_i32_0 = arith.constant 0 : i32
    %c0_i32_1 = arith.constant 0 : i32
    return %c0_i32, %c0_i32_0 : i32, i32
  }
  func.func @transform_9(%arg0: i32) -> (i32, i32) {
    %c0_i32 = arith.constant 0 : i32
    %c0_i32_0 = arith.constant 0 : i32
    %c0_i32_1 = arith.constant 0 : i32
    return %c0_i32, %c0_i32_0 : i32, i32
  }
  func.func @transform_10(%arg0: i32) -> (i32, i32) {
    %c0_i32 = arith.constant 0 : i32
    %c0_i32_0 = arith.constant 0 : i32
    %c0_i32_1 = arith.constant 0 : i32
    return %c0_i32, %c0_i32_0 : i32, i32
  }
  func.func @transform_11(%arg0: i32) -> (i32, i32) {
    %c0_i32 = arith.constant 0 : i32
    %c0_i32_0 = arith.constant 0 : i32
    %c0_i32_1 = arith.constant 0 : i32
    return %c0_i32, %c0_i32_0 : i32, i32
  }
}

</mosaic_0001>

<llo_original>
// kernel: tpu_custom_call.1
$region0: #{tpu_custom_call.1}
  #allocation0 [shape = 'u32[]', space=smem, size = 0x4, offset = 0x4, fixed_abs, tag = 'smem constant byte address 0x4 - core index']
  #allocation1 [shape = 'u32[144,128]{1,0:T(1,128)}', space=vmem, size = 0x12000, scoped, tag = 'internal scratch']
  #allocation2 [shape = 'bf16[128,32]{1,0:T(8,128)(2,1)}', space=vmem, size = 0x8000, scoped, tag = 'scratch operand']
  %s0 = inlined_call_operand.vmem [shape: bf16[128,128], index: 0, kind: input, shape index: {}]
  %s1 = inlined_call_operand.vmem [shape: bf16[128,16], index: 1, kind: input, shape index: {}]
  %s2 = inlined_call_operand.hbm [shape: bf16[16,32], index: 2, kind: input, shape index: {}]
  %s3 = inlined_call_operand.vmem [shape: f32[1,32], index: 3, kind: input, shape index: {}]
  %s4 = inlined_call_operand.vmem [shape: bf16[2,32,32], index: 4, kind: input, shape index: {}]
  %s5 = inlined_call_operand.vmem [shape: f32[2,1,32], index: 5, kind: input, shape index: {}]
  %s6 = inlined_call_operand.vmem [shape: bf16[2,128], index: 6, kind: input, shape index: {}]
  %s7 = inlined_call_operand.hbm [shape: f32[32,32], index: 7, kind: input, shape index: {}]
  %s8 = inlined_call_operand.vmem [shape: f32[1,32], index: 8, kind: input, shape index: {}]
  %s9 = inlined_call_operand.vmem [shape: f32[32,4], index: 9, kind: input, shape index: {}]
  %s10 = inlined_call_operand.vmem [shape: f32[1,4], index: 10, kind: input, shape index: {}]
  %s11 = inlined_call_operand.hbm [shape: f32[2,4], index: 11, kind: output, shape index: {}]
  %s12 = sld [smem:[#allocation0]]
  $region97: #{tpu_custom_call.1} parent=0
    _
  %s14 = ssub.s32 1, %s12
  %s15 = scalar_select 0, %s14, %s12
  $region1: #{tpu_custom_call.1} parent=0
    #allocation3 [shape = 'u8[4096]{0}', space=vmem, size = 0x1000, scoped, tag = 'input window, operand 2, single buffered']
    #allocation4 [shape = 's32[2]{0}', space=sflag, size = 0x8, scoped, tag = 'scoped memory for tpu_custom_call.1']
    #allocation5 [shape = 's32[2]{0}', space=sflag, size = 0x8, scoped, tag = 'scoped memory for tpu_custom_call.1']
    #allocation6 [shape = 'u8[16384]{0}', space=vmem, size = 0x4000, scoped, tag = 'input window, operand 7, single buffered']
    #allocation7 [shape = 's32[1]{0}', space=sflag, size = 0x4, scoped, tag = 'scoped memory for tpu_custom_call.1']
    #allocation8 [shape = 'u8[1024]{0}', space=vmem, size = 0x400, scoped, tag = 'output window, operand 0, single buffered']
    %16 = vsyncpa [#allocation4], 0
    %17 = vsyncpa [#allocation7], 0
    %18 = vsyncpa [#allocation5], 0
    loop: start=0, step=1, limit=4
    $region2: #{tpu_custom_call.1} parent=1 // loop_pre_header
      _
    $region3: #{tpu_custom_call.1} parent=1 // loop_header
      %s20 = sphi 0, %s24
      %p21 = scmp.ge.s32.totalorder %s20, 4
      %s28 = sphi 0, %s28
      %s30 = sphi 0, %s28
      %s31 = sphi 0, %s30
      %s45 = sphi 0, %s31
      %s49 = sphi 0, %s49
      %s51 = sphi 0, %s49
      %s52 = sphi 0, %s51
      %s66 = sphi 0, %s52
      %s70 = sphi 0, %s70
      %s72 = sphi 0, %s70
      %s73 = sphi 0, %s72
      %s87 = sphi 0, %s73
      %s91 = sphi 0, %s91
      %s93 = sphi 0, %s91
      %s94 = sphi 0, %s93
      %s108 = sphi 0, %s94
      %s114 = sphi 0, %s116
      %s117 = sphi 0, %s114
      %s118 = sphi 0, %s117
      %s134 = sphi 0, %s118
      %s140 = sphi 0, %s142
      %s143 = sphi 0, %s140
      %s144 = sphi 0, %s143
      %s160 = sphi 0, %s144
      %s164 = sphi 0, %s164
      %s166 = sphi 0, %s164
      %s167 = sphi 0, %s166
      %s181 = sphi 0, %s167
      %s185 = sphi 0, %s185
      %s187 = sphi 0, %s185
      %s188 = sphi 0, %s187
      %s202 = sphi 0, %s188
      %s206 = sphi 0, %s206
      %s208 = sphi 0, %s206
      %s209 = sphi 0, %s208
      %s223 = sphi 0, %s209
      %s227 = sphi 0, %s227
      %s229 = sphi 0, %s227
      %s230 = sphi 0, %s229
      %s244 = sphi 0, %s230
      %s248 = sphi 0, %s248
      %s250 = sphi 0, %s248
      %s251 = sphi 0, %s250
      %s265 = sphi 0, %s251
      %s269 = sphi 0, %s269
      %s271 = sphi 0, %s269
      %s272 = sphi 0, %s271
      %s286 = sphi 0, %s272
    $region4: #{tpu_custom_call.1} parent=1 // loop_header_branch
      %23 = sbr.rel (%p21) target = $region8
    $region5: #{tpu_custom_call.1} parent=1 // loop_body
      %s25 = ssub.s32 %s20, 1
      %s26 = ssub.s32 %s20, 2
      %s27 = sadd.s32 %s20, 1
      %s29 = sadd.s32 %s28, 1
      %p32 = scmp.eq.s32.totalorder %s20, 1
      %p33 = scmp.ne.s32.totalorder %s28, %s30
      %p34 = scmp.eq.s32.totalorder %s20, 0
      %p35 = por %p33, %p34
      %p36 = scmp.ne.s32.totalorder %s28, %s30
      %p37 = scmp.eq.s32.totalorder %s25, 1
      %p38 = por %p36, %p37
      %p39 = scmp.ne.s32.totalorder %s30, %s31
      %p40 = scmp.eq.s32.totalorder %s25, 0
      %p41 = por %p39, %p40
      %p42 = scmp.ne.s32.totalorder %s30, %s31
      %p43 = scmp.eq.s32.totalorder %s26, 1
      %p44 = por %p42, %p43
      %p46 = scmp.ne.s32.totalorder %s31, %s45
      %p47 = scmp.eq.s32.totalorder %s26, 0
      %p48 = por %p46, %p47
      %s50 = sadd.s32 %s49, 1
      %p53 = scmp.eq.s32.totalorder %s20, 1
      %p54 = scmp.ne.s32.totalorder %s49, %s51
      %p55 = scmp.eq.s32.totalorder %s20, 0
      %p56 = por %p54, %p55
      %p57 = scmp.ne.s32.totalorder %s49, %s51
      %p58 = scmp.eq.s32.totalorder %s25, 1
      %p59 = por %p57, %p58
      %p60 = scmp.ne.s32.totalorder %s51, %s52
      %p61 = scmp.eq.s32.totalorder %s25, 0
      %p62 = por %p60, %p61
      %p63 = scmp.ne.s32.totalorder %s51, %s52
      %p64 = scmp.eq.s32.totalorder %s26, 1
      %p65 = por %p63, %p64
      %p67 = scmp.ne.s32.totalorder %s52, %s66
      %p68 = scmp.eq.s32.totalorder %s26, 0
      %p69 = por %p67, %p68
      %s71 = sadd.s32 %s70, 1
      %p74 = scmp.eq.s32.totalorder %s20, 1
      %p75 = scmp.ne.s32.totalorder %s70, %s72
      %p76 = scmp.eq.s32.totalorder %s20, 0
      %p77 = por %p75, %p76
      %p78 = scmp.ne.s32.totalorder %s70, %s72
      %p79 = scmp.eq.s32.totalorder %s25, 1
      %p80 = por %p78, %p79
      %p81 = scmp.ne.s32.totalorder %s72, %s73
      %p82 = scmp.eq.s32.totalorder %s25, 0
      %p83 = por %p81, %p82
      %p84 = scmp.ne.s32.totalorder %s72, %s73
      %p85 = scmp.eq.s32.totalorder %s26, 1
      %p86 = por %p84, %p85
      %p88 = scmp.ne.s32.totalorder %s73, %s87
      %p89 = scmp.eq.s32.totalorder %s26, 0
      %p90 = por %p88, %p89
      %s92 = sadd.s32 %s91, 1
      %p95 = scmp.eq.s32.totalorder %s20, 1
      %p96 = scmp.ne.s32.totalorder %s91, %s93
      %p97 = scmp.eq.s32.totalorder %s20, 0
      %p98 = por %p96, %p97
      %p99 = scmp.ne.s32.totalorder %s91, %s93
      %p100 = scmp.eq.s32.totalorder %s25, 1
      %p101 = por %p99, %p100
      %p102 = scmp.ne.s32.totalorder %s93, %s94
      %p103 = scmp.eq.s32.totalorder %s25, 0
      %p104 = por %p102, %p103
      %p105 = scmp.ne.s32.totalorder %s93, %s94
      %p106 = scmp.eq.s32.totalorder %s26, 1
      %p107 = por %p105, %p106
      %p109 = scmp.ne.s32.totalorder %s94, %s108
      %p110 = scmp.eq.s32.totalorder %s26, 0
      %p111 = por %p109, %p110
      %s112 = ssub.s32 %s20, %s27
      %p113 = scmp.eq.s32.totalorder %s112, 0
      %s115 = sadd.s32 %s114, 1
      %s116 = scalar_select %p113, %s114, %s115
      %p119 = pneg %p113
      %p120 = scmp.eq.s32.totalorder %s20, 1
      %p121 = por %p119, %p120
      %p122 = scmp.ne.s32.totalorder %s114, %s117
      %p123 = scmp.eq.s32.totalorder %s20, 0
      %p124 = por %p122, %p123
      %p125 = scmp.ne.s32.totalorder %s114, %s117
      %p126 = scmp.eq.s32.totalorder %s25, 1
      %p127 = por %p125, %p126
      %p128 = scmp.ne.s32.totalorder %s117, %s118
      %p129 = scmp.eq.s32.totalorder %s25, 0
      %p130 = por %p128, %p129
      %p131 = scmp.ne.s32.totalorder %s117, %s118
      %p132 = scmp.eq.s32.totalorder %s26, 1
      %p133 = por %p131, %p132
      %p135 = scmp.ne.s32.totalorder %s118, %s134
      %p136 = scmp.eq.s32.totalorder %s26, 0
      %p137 = por %p135, %p136
      %s138 = ssub.s32 %s20, %s27
      %p139 = scmp.eq.s32.totalorder %s138, 0
      %s141 = sadd.s32 %s140, 1
      %s142 = scalar_select %p139, %s140, %s141
      %p145 = pneg %p139
      %p146 = scmp.eq.s32.totalorder %s20, 1
      %p147 = por %p145, %p146
      %p148 = scmp.ne.s32.totalorder %s140, %s143
      %p149 = scmp.eq.s32.totalorder %s20, 0
      %p150 = por %p148, %p149
      %p151 = scmp.ne.s32.totalorder %s140, %s143
      %p152 = scmp.eq.s32.totalorder %s25, 1
      %p153 = por %p151, %p152
      %p154 = scmp.ne.s32.totalorder %s143, %s144
      %p155 = scmp.eq.s32.totalorder %s25, 0
      %p156 = por %p154, %p155
      %p157 = scmp.ne.s32.totalorder %s143, %s144
      %p158 = scmp.eq.s32.totalorder %s26, 1
      %p159 = por %p157, %p158
      %p161 = scmp.ne.s32.totalorder %s144, %s160
      %p162 = scmp.eq.s32.totalorder %s26, 0
      %p163 = por %p161, %p162
      %s165 = sadd.s32 %s164, 1
      %p168 = scmp.eq.s32.totalorder %s20, 1
      %p169 = scmp.ne.s32.totalorder %s164, %s166
      %p170 = scmp.eq.s32.totalorder %s20, 0
      %p171 = por %p169, %p170
      %p172 = scmp.ne.s32.totalorder %s164, %s166
      %p173 = scmp.eq.s32.totalorder %s25, 1
      %p174 = por %p172, %p173
      %p175 = scmp.ne.s32.totalorder %s166, %s167
      %p176 = scmp.eq.s32.totalorder %s25, 0
      %p177 = por %p175, %p176
      %p178 = scmp.ne.s32.totalorder %s166, %s167
      %p179 = scmp.eq.s32.totalorder %s26, 1
      %p180 = por %p178, %p179
      %p182 = scmp.ne.s32.totalorder %s167, %s181
      %p183 = scmp.eq.s32.totalorder %s26, 0
      %p184 = por %p182, %p183
      %s186 = sadd.s32 %s185, 1
      %p189 = scmp.eq.s32.totalorder %s20, 1
      %p190 = scmp.ne.s32.totalorder %s185, %s187
      %p191 = scmp.eq.s32.totalorder %s20, 0
      %p192 = por %p190, %p191
      %p193 = scmp.ne.s32.totalorder %s185, %s187
      %p194 = scmp.eq.s32.totalorder %s25, 1
      %p195 = por %p193, %p194
      %p196 = scmp.ne.s32.totalorder %s187, %s188
      %p197 = scmp.eq.s32.totalorder %s25, 0
      %p198 = por %p196, %p197
      %p199 = scmp.ne.s32.totalorder %s187, %s188
      %p200 = scmp.eq.s32.totalorder %s26, 1
      %p201 = por %p199, %p200
      %p203 = scmp.ne.s32.totalorder %s188, %s202
      %p204 = scmp.eq.s32.totalorder %s26, 0
      %p205 = por %p203, %p204
      %s207 = sadd.s32 %s206, 1
      %p210 = scmp.eq.s32.totalorder %s20, 1
      %p211 = scmp.ne.s32.totalorder %s206, %s208
      %p212 = scmp.eq.s32.totalorder %s20, 0
      %p213 = por %p211, %p212
      %p214 = scmp.ne.s32.totalorder %s206, %s208
      %p215 = scmp.eq.s32.totalorder %s25, 1
      %p216 = por %p214, %p215
      %p217 = scmp.ne.s32.totalorder %s208, %s209
      %p218 = scmp.eq.s32.totalorder %s25, 0
      %p219 = por %p217, %p218
      %p220 = scmp.ne.s32.totalorder %s208, %s209
      %p221 = scmp.eq.s32.totalorder %s26, 1
      %p222 = por %p220, %p221
      %p224 = scmp.ne.s32.totalorder %s209, %s223
      %p225 = scmp.eq.s32.totalorder %s26, 0
      %p226 = por %p224, %p225
      %s228 = sadd.s32 %s227, 1
      %p231 = scmp.eq.s32.totalorder %s20, 1
      %p232 = scmp.ne.s32.totalorder %s227, %s229
      %p233 = scmp.eq.s32.totalorder %s20, 0
      %p234 = por %p232, %p233
      %p235 = scmp.ne.s32.totalorder %s227, %s229
      %p236 = scmp.eq.s32.totalorder %s25, 1
      %p237 = por %p235, %p236
      %p238 = scmp.ne.s32.totalorder %s229, %s230
      %p239 = scmp.eq.s32.totalorder %s25, 0
      %p240 = por %p238, %p239
      %p241 = scmp.ne.s32.totalorder %s229, %s230
      %p242 = scmp.eq.s32.totalorder %s26, 1
      %p243 = por %p241, %p242
      %p245 = scmp.ne.s32.totalorder %s230, %s244
      %p246 = scmp.eq.s32.totalorder %s26, 0
      %p247 = por %p245, %p246
      %s249 = sadd.s32 %s248, 1
      %p252 = scmp.eq.s32.totalorder %s20, 1
      %p253 = scmp.ne.s32.totalorder %s248, %s250
      %p254 = scmp.eq.s32.totalorder %s20, 0
      %p255 = por %p253, %p254
      %p256 = scmp.ne.s32.totalorder %s248, %s250
      %p257 = scmp.eq.s32.totalorder %s25, 1
      %p258 = por %p256, %p257
      %p259 = scmp.ne.s32.totalorder %s250, %s251
      %p260 = scmp.eq.s32.totalorder %s25, 0
      %p261 = por %p259, %p260
      %p262 = scmp.ne.s32.totalorder %s250, %s251
      %p263 = scmp.eq.s32.totalorder %s26, 1
      %p264 = por %p262, %p263
      %p266 = scmp.ne.s32.totalorder %s251, %s265
      %p267 = scmp.eq.s32.totalorder %s26, 0
      %p268 = por %p266, %p267
      %s270 = sadd.s32 %s269, 1
      %p273 = scmp.eq.s32.totalorder %s20, 1
      %p274 = scmp.ne.s32.totalorder %s269, %s271
      %p275 = scmp.eq.s32.totalorder %s20, 0
      %p276 = por %p274, %p275
      %p277 = scmp.ne.s32.totalorder %s269, %s271
      %p278 = scmp.eq.s32.totalorder %s25, 1
      %p279 = por %p277, %p278
      %p280 = scmp.ne.s32.totalorder %s271, %s272
      %p281 = scmp.eq.s32.totalorder %s25, 0
      %p282 = por %p280, %p281
      %p283 = scmp.ne.s32.totalorder %s271, %s272
      %p284 = scmp.eq.s32.totalorder %s26, 1
      %p285 = por %p283, %p284
      %p287 = scmp.ne.s32.totalorder %s272, %s286
      %p288 = scmp.eq.s32.totalorder %s26, 0
      %p289 = por %p287, %p288
      %p290 = scmp.le.s32.totalorder 1, %s20
      %p291 = scmp.lt.s32.totalorder %s20, 3
      %p292 = pnand %p290, %p291
      %p293 = pneg %p292
      // Predicated region
      $region9: #{tpu_custom_call.1} parent=5 // pred_check
        _
      $region10: #{tpu_custom_call.1} parent=5 // pred_check_branch
        %295 = sbr.rel (%p292) target = $region12
      $region11: #{tpu_custom_call.1} parent=5 // pred_region
        %s296 = ssub.s32 %s20, 1
        // Predicated region
        $region13: #{tpu_custom_call.1} parent=11 // pred_check
          %p297 = pneg %p41
        $region14: #{tpu_custom_call.1} parent=11 // pred_check_branch
          %299 = sbr.rel (%p297) target = $region16
        $region15: #{tpu_custom_call.1} parent=11 // pred_region
          _
        $region16: #{tpu_custom_call.1} parent=11 // pred_fallthru
          _
        // Predicated region
        $region17: #{tpu_custom_call.1} parent=11 // pred_check
          %p300 = pneg %p62
        $region18: #{tpu_custom_call.1} parent=11 // pred_check_branch
          %302 = sbr.rel (%p300) target = $region20
        $region19: #{tpu_custom_call.1} parent=11 // pred_region
          _
        $region20: #{tpu_custom_call.1} parent=11 // pred_fallthru
          _
        // Predicated region
        $region21: #{tpu_custom_call.1} parent=11 // pred_check
          %p303 = pneg %p83
        $region22: #{tpu_custom_call.1} parent=11 // pred_check_branch
          %305 = sbr.rel (%p303) target = $region24
        $region23: #{tpu_custom_call.1} parent=11 // pred_region
          %s307 = ssub.s32 128, 128
          %308 = vsyncadd [#allocation4], %s307
          %s309 = sshll.u32 [#allocation3], 4
          %s310 = int_to_ptr.vmem [resolvable:$true] %s309
          %315 = dma.hbm_to_vmem [thread:$0]  %s2, 128, %s310, [#allocation4], 64, 64, 4
        $region24: #{tpu_custom_call.1} parent=11 // pred_fallthru
          _
        // Predicated region
        $region25: #{tpu_custom_call.1} parent=11 // pred_check
          %p316 = pneg %p104
        $region26: #{tpu_custom_call.1} parent=11 // pred_check_branch
          %318 = sbr.rel (%p316) target = $region28
        $region27: #{tpu_custom_call.1} parent=11 // pred_region
          _
        $region28: #{tpu_custom_call.1} parent=11 // pred_fallthru
          _
        // Predicated region
        $region29: #{tpu_custom_call.1} parent=11 // pred_check
          %p319 = pneg %p177
        $region30: #{tpu_custom_call.1} parent=11 // pred_check_branch
          %321 = sbr.rel (%p319) target = $region32
        $region31: #{tpu_custom_call.1} parent=11 // pred_region
          _
        $region32: #{tpu_custom_call.1} parent=11 // pred_fallthru
          _
        // Predicated region
        $region33: #{tpu_custom_call.1} parent=11 // pred_check
          %p322 = pneg %p198
        $region34: #{tpu_custom_call.1} parent=11 // pred_check_branch
          %324 = sbr.rel (%p322) target = $region36
        $region35: #{tpu_custom_call.1} parent=11 // pred_region
          %s326 = ssub.s32 512, 512
          %327 = vsyncadd [#allocation7], %s326
          %s328 = sshll.u32 [#allocation6], 4
          %s329 = int_to_ptr.vmem [resolvable:$true] %s328
          %334 = dma.hbm_to_vmem [thread:$0]  %s7, 512, %s329, [#allocation7], 128, 128, 8
        $region36: #{tpu_custom_call.1} parent=11 // pred_fallthru
          _
        // Predicated region
        $region37: #{tpu_custom_call.1} parent=11 // pred_check
          %p335 = pneg %p219
        $region38: #{tpu_custom_call.1} parent=11 // pred_check_branch
          %337 = sbr.rel (%p335) target = $region40
        $region39: #{tpu_custom_call.1} parent=11 // pred_region
          _
        $region40: #{tpu_custom_call.1} parent=11 // pred_fallthru
          _
        // Predicated region
        $region41: #{tpu_custom_call.1} parent=11 // pred_check
          %p338 = pneg %p240
        $region42: #{tpu_custom_call.1} parent=11 // pred_check_branch
          %340 = sbr.rel (%p338) target = $region44
        $region43: #{tpu_custom_call.1} parent=11 // pred_region
          _
        $region44: #{tpu_custom_call.1} parent=11 // pred_fallthru
          _
        // Predicated region
        $region45: #{tpu_custom_call.1} parent=11 // pred_check
          %p341 = pneg %p261
        $region46: #{tpu_custom_call.1} parent=11 // pred_check_branch
          %343 = sbr.rel (%p341) target = $region48
        $region47: #{tpu_custom_call.1} parent=11 // pred_region
          _
        $region48: #{tpu_custom_call.1} parent=11 // pred_fallthru
          _
      $region12: #{tpu_custom_call.1} parent=5 // pred_fallthru
        _
      %p344 = scmp.lt.s32.totalorder %s20, 2
      // Predicated region
      $region49: #{tpu_custom_call.1} parent=5 // pred_check
        %p345 = pneg %p344
      $region50: #{tpu_custom_call.1} parent=5 // pred_check_branch
        %347 = sbr.rel (%p345) target = $region52
      $region51: #{tpu_custom_call.1} parent=5 // pred_region
        // Predicated region
        $region53: #{tpu_custom_call.1} parent=51 // pred_check
          %p348 = pneg %p124
        $region54: #{tpu_custom_call.1} parent=51 // pred_check_branch
          %350 = sbr.rel (%p348) target = $region56
        $region55: #{tpu_custom_call.1} parent=51 // pred_region
          %p351 = scmp.lt.s32.totalorder %s20, 1
          %s352 = scalar_select %p351, %s20, 1
          %s353 = smul.addr %s352, 4
          %s354 = smul.addr %s353, 4
          %s355 = scalar_lea.vmem %s4, %s354
        $region56: #{tpu_custom_call.1} parent=51 // pred_fallthru
          _
        // Predicated region
        $region57: #{tpu_custom_call.1} parent=51 // pred_check
          %p356 = pneg %p150
        $region58: #{tpu_custom_call.1} parent=51 // pred_check_branch
          %358 = sbr.rel (%p356) target = $region60
        $region59: #{tpu_custom_call.1} parent=51 // pred_region
          %p359 = scmp.lt.s32.totalorder %s20, 1
          %s360 = scalar_select %p359, %s20, 1
          %s361 = scalar_lea.vmem %s5, %s360
        $region60: #{tpu_custom_call.1} parent=51 // pred_fallthru
          _
      $region52: #{tpu_custom_call.1} parent=5 // pred_fallthru
        _
      %p362 = scmp.le.s32.totalorder 1, %s20
      %p363 = scmp.lt.s32.totalorder %s20, 3
      %p364 = pnand %p362, %p363
      %p365 = pneg %p364
      // Predicated region
      $region61: #{tpu_custom_call.1} parent=5 // pred_check
        _
      $region62: #{tpu_custom_call.1} parent=5 // pred_check_branch
        %367 = sbr.rel (%p364) target = $region64
      $region63: #{tpu_custom_call.1} parent=5 // pred_region
        %s368 = ssub.s32 %s20, 1
        // Predicated region
        $region65: #{tpu_custom_call.1} parent=63 // pred_check
          %p369 = pneg %p83
        $region66: #{tpu_custom_call.1} parent=63 // pred_check_branch
          %371 = sbr.rel (%p369) target = $region68
        $region67: #{tpu_custom_call.1} parent=63 // pred_region
          %372 = dma.done [#allocation4], 128
        $region68: #{tpu_custom_call.1} parent=63 // pred_fallthru
          _
        // Predicated region
        $region69: #{tpu_custom_call.1} parent=63 // pred_check
          %p373 = pneg %p198
        $region70: #{tpu_custom_call.1} parent=63 // pred_check_branch
          %375 = sbr.rel (%p373) target = $region72
        $region71: #{tpu_custom_call.1} parent=63 // pred_region
          %376 = dma.done [#allocation7], 512
        $region72: #{tpu_custom_call.1} parent=63 // pred_fallthru
          _
        %p377 = pneg %p41
        %p378 = pneg %p38
        %p379 = pneg %p62
        %p380 = pneg %p59
        %p381 = pneg %p83
        %p382 = pneg %p80
        %p383 = pneg %p104
        %p384 = pneg %p101
        %p385 = scmp.lt.s32.totalorder %s25, 1
        %s386 = scalar_select %p385, %s25, 1
        %s387 = smul.addr %s386, 4
        %s388 = smul.addr %s387, 4
        %s389 = scalar_lea.vmem %s4, %s388
        %p390 = pneg %p130
        %p391 = pneg %p127
        %p392 = scmp.lt.s32.totalorder %s25, 1
        %s393 = scalar_select %p392, %s25, 1
        %s394 = scalar_lea.vmem %s5, %s393
        %p395 = pneg %p156
        %p396 = pneg %p153
        %p397 = pneg %p177
        %p398 = pneg %p174
        %p399 = pneg %p198
        %p400 = pneg %p195
        %p401 = pneg %p219
        %p402 = pneg %p216
        %p403 = pneg %p240
        %p404 = pneg %p237
        %p405 = pneg %p261
        %p406 = pneg %p258
        %p407 = pneg %p282
        %p408 = pneg %p279
        %p409 = scmp.lt.s32.totalorder %s25, 1
        %s410 = scalar_select %p409, %s25, 1
        %s411 = smul.addr %s410, 4
        %s412 = smul.addr %s411, 4
        %s413 = scalar_lea.vmem %s4, %s412
        %p414 = scmp.lt.s32.totalorder %s25, 1
        %s415 = scalar_select %p414, %s25, 1
        %s416 = scalar_lea.vmem %s5, %s415
        %p418 = scmp.eq.s32.totalorder %s25, 0
        // Predicated region
        $region73: #{tpu_custom_call.1} parent=63 // pred_check
          %p419 = pneg %p418
        $region74: #{tpu_custom_call.1} parent=63 // pred_check_branch
          %421 = sbr.rel (%p419) target = $region76
        $region75: #{tpu_custom_call.1} parent=63 // pred_region
          %v422 = vld [vmem:[%s1] sm:$0xf]
          %v423 = vld [vmem:[%s1 + $0x4] sm:$0xf]
          %v424 = vld [vmem:[%s1 + $0x8] sm:$0xf]
          %v425 = vld [vmem:[%s1 + $0xc] sm:$0xf]
          %v426 = vld [vmem:[%s1 + $0x10] sm:$0xf]
          %v427 = vld [vmem:[%s1 + $0x14] sm:$0xf]
          %v428 = vld [vmem:[%s1 + $0x18] sm:$0xf]
          %v429 = vld [vmem:[%s1 + $0x1c] sm:$0xf]
          %v430 = vld [vmem:[%s1 + $0x20] sm:$0xf]
          %v431 = vld [vmem:[%s1 + $0x24] sm:$0xf]
          %v432 = vld [vmem:[%s1 + $0x28] sm:$0xf]
          %v433 = vld [vmem:[%s1 + $0x2c] sm:$0xf]
          %v434 = vld [vmem:[%s1 + $0x30] sm:$0xf]
          %v435 = vld [vmem:[%s1 + $0x34] sm:$0xf]
          %v436 = vld [vmem:[%s1 + $0x38] sm:$0xf]
          %v437 = vld [vmem:[%s1 + $0x3c] sm:$0xf]
          %v438 = vld [vmem:[#allocation3] sm:$0xf]
          %v439 = vld [vmem:[#allocation3 + $0x4] sm:$0xf]
          %v440 = vld [vmem:[%s3] sm:$0x1]
          %v442 = vlaneseq
          %v443 = vshrl.u32 %v442, 7
          %v444 = vsub.s32 0, %v443
          %v445 = vrot.slane %v440, %v444
          %v463 = vunpack.c.l.b16 %v422
          %v464 = vunpack.c.l.b16 %v423
          %v465 = vunpack.c.l.b16 %v424
          %v466 = vunpack.c.l.b16 %v425
          %v467 = vunpack.c.l.b16 %v426
          %v468 = vunpack.c.l.b16 %v427
          %v469 = vunpack.c.l.b16 %v428
          %v470 = vunpack.c.l.b16 %v429
          %v471 = vunpack.c.l.b16 %v430
          %v472 = vunpack.c.l.b16 %v431
          %v473 = vunpack.c.l.b16 %v432
          %v474 = vunpack.c.l.b16 %v433
          %v475 = vunpack.c.l.b16 %v434
          %v476 = vunpack.c.l.b16 %v435
          %v477 = vunpack.c.l.b16 %v436
          %v478 = vunpack.c.l.b16 %v437
          %v479 = vpack.c.b16 %v464, %v463
          %v480 = vpack.c.b16 %v466, %v465
          %v481 = vpack.c.b16 %v468, %v467
          %v482 = vpack.c.b16 %v470, %v469
          %v483 = vpack.c.b16 %v472, %v471
          %v484 = vpack.c.b16 %v474, %v473
          %v485 = vpack.c.b16 %v476, %v475
          %v486 = vpack.c.b16 %v478, %v477
          %v489 = vunpack.c.l.b16 %v438
          %v490 = vunpack.c.l.b16 %v439
          %v491 = vpack.c.b16 %v490, %v489
          %vm493 = vcmask 130048
          %v495 = vsel %vm493, %v479, 0
          %v498 = vsel %vm493, %v480, 0
          %v501 = vsel %vm493, %v481, 0
          %v504 = vsel %vm493, %v482, 0
          %v507 = vsel %vm493, %v483, 0
          %v510 = vsel %vm493, %v484, 0
          %v513 = vsel %vm493, %v485, 0
          %v516 = vsel %vm493, %v486, 0
          %518 = vmatprep.subr.bf16.mxu0 0
          %519 = vmatpush1.bf16.msra.mxu0 0
          %520 = vmatprep.subr.bf16.mxu0 0
          %521 = vmatpush1.bf16.msra.mxu0 0
          %522 = vmatprep.subr.bf16.mxu0 0
          %523 = vmatpush1.bf16.msra.mxu0 0
          %524 = vmatprep.subr.bf16.mxu0 0
          %525 = vmatpush1.bf16.msra.mxu0 0
          %526 = vmatprep.subr.bf16.mxu0 0
          %527 = vmatpush1.bf16.msra.mxu0 0
          %528 = vmatprep.subr.bf16.mxu0 0
          %529 = vmatpush1.bf16.msra.mxu0 0
          %530 = vmatprep.subr.bf16.mxu0 0
          %531 = vmatpush1.bf16.msra.mxu0 0
          %532 = vmatprep.subr.bf16.mxu0 0
          %533 = vmatpush1.bf16.msra.mxu0 %v491
          %534 = vmatprep.subr.bf16.mxu0 0
          %535 = vmatpush2.bf16.msra.mxu0 0
          %536 = vmatprep.subr.bf16.mxu0 0
          %537 = vmatpush2.bf16.msra.mxu0 0
          %538 = vmatprep.subr.bf16.mxu0 0
          %539 = vmatpush2.bf16.msra.mxu0 0
          %540 = vmatprep.subr.bf16.mxu0 0
          %541 = vmatpush2.bf16.msra.mxu0 0
          %542 = vmatprep.subr.bf16.mxu0 0
          %543 = vmatpush2.bf16.msra.mxu0 0
          %544 = vmatprep.subr.bf16.mxu0 0
          %545 = vmatpush2.bf16.msra.mxu0 0
          %546 = vmatprep.subr.bf16.mxu0 0
          %547 = vmatpush2.bf16.msra.mxu0 0
          %548 = vmatprep.subr.bf16.mxu0 0
          %549 = vmatpush2.bf16.msra.mxu0 0
          %550 = vmatprep.mubr.bf16.mxu0 0
          %551 = vmatmul.mubr.bf16.gmra.mxu0 %v495
          %v552 = vpop.f32.mrf.mxu0
          %v553 = vadd.f32 %v445, %v552
          %v554 = vpop.f32.mrf.mxu0
          %v555 = vpop.f32.mrf.mxu0
          %v556 = vadd.f32 %v445, %v555
          %v557 = vpop.f32.mrf.mxu0
          %558 = vmatprep.mubr.bf16.mxu0 0
          %559 = vmatmul.mubr.bf16.gmra.mxu0 %v498
          %v560 = vpop.f32.mrf.mxu0
          %v561 = vadd.f32 %v445, %v560
          %v562 = vpop.f32.mrf.mxu0
          %v563 = vpop.f32.mrf.mxu0
          %v564 = vadd.f32 %v445, %v563
          %v565 = vpop.f32.mrf.mxu0
          %566 = vmatprep.mubr.bf16.mxu0 0
          %567 = vmatmul.mubr.bf16.gmra.mxu0 %v501
          %v568 = vpop.f32.mrf.mxu0
          %v569 = vadd.f32 %v445, %v568
          %v570 = vpop.f32.mrf.mxu0
          %v571 = vpop.f32.mrf.mxu0
          %v572 = vadd.f32 %v445, %v571
          %v573 = vpop.f32.mrf.mxu0
          %574 = vmatprep.mubr.bf16.mxu0 0
          %575 = vmatmul.mubr.bf16.gmra.mxu0 %v504
          %v576 = vpop.f32.mrf.mxu0
          %v577 = vadd.f32 %v445, %v576
          %v578 = vpop.f32.mrf.mxu0
          %v579 = vpop.f32.mrf.mxu0
          %v580 = vadd.f32 %v445, %v579
          %v581 = vpop.f32.mrf.mxu0
          %582 = vmatprep.mubr.bf16.mxu0 0
          %583 = vmatmul.mubr.bf16.gmra.mxu0 %v507
          %v584 = vpop.f32.mrf.mxu0
          %v585 = vadd.f32 %v445, %v584
          %v586 = vpop.f32.mrf.mxu0
          %v587 = vpop.f32.mrf.mxu0
          %v588 = vadd.f32 %v445, %v587
          %v589 = vpop.f32.mrf.mxu0
          %590 = vmatprep.mubr.bf16.mxu0 0
          %591 = vmatmul.mubr.bf16.gmra.mxu0 %v510
          %v592 = vpop.f32.mrf.mxu0
          %v593 = vadd.f32 %v445, %v592
          %v594 = vpop.f32.mrf.mxu0
          %v595 = vpop.f32.mrf.mxu0
          %v596 = vadd.f32 %v445, %v595
          %v597 = vpop.f32.mrf.mxu0
          %598 = vmatprep.mubr.bf16.mxu0 0
          %599 = vmatmul.mubr.bf16.gmra.mxu0 %v513
          %v600 = vpop.f32.mrf.mxu0
          %v601 = vadd.f32 %v445, %v600
          %v602 = vpop.f32.mrf.mxu0
          %v603 = vpop.f32.mrf.mxu0
          %v604 = vadd.f32 %v445, %v603
          %v605 = vpop.f32.mrf.mxu0
          %606 = vmatprep.mubr.bf16.mxu0 0
          %607 = vmatmul.mubr.bf16.gmra.mxu0 %v516
          %v608 = vpop.f32.mrf.mxu0
          %v609 = vadd.f32 %v445, %v608
          %v610 = vpop.f32.mrf.mxu0
          %v611 = vpop.f32.mrf.mxu0
          %v612 = vadd.f32 %v445, %v611
          %v613 = vpop.f32.mrf.mxu0
          %614 = vdwg.mxu0
          %v615 = vpack.c.bf16 %v556, %v553
          %v616 = vpack.c.bf16 %v564, %v561
          %v617 = vpack.c.bf16 %v572, %v569
          %v618 = vpack.c.bf16 %v580, %v577
          %v619 = vpack.c.bf16 %v588, %v585
          %v620 = vpack.c.bf16 %v596, %v593
          %v621 = vpack.c.bf16 %v604, %v601
          %v622 = vpack.c.bf16 %v612, %v609
          %v623 = vld [vmem:[%s0] sm:$0xf]
          %v624 = vld [vmem:[%s0 + $0x4] sm:$0xf]
          %v625 = vld [vmem:[%s0 + $0x8] sm:$0xf]
          %v626 = vld [vmem:[%s0 + $0xc] sm:$0xf]
          %v627 = vld [vmem:[%s0 + $0x10] sm:$0xf]
          %v628 = vld [vmem:[%s0 + $0x14] sm:$0xf]
          %v629 = vld [vmem:[%s0 + $0x18] sm:$0xf]
          %v630 = vld [vmem:[%s0 + $0x1c] sm:$0xf]
          %v631 = vld [vmem:[%s0 + $0x20] sm:$0xf]
          %v632 = vld [vmem:[%s0 + $0x24] sm:$0xf]
          %v633 = vld [vmem:[%s0 + $0x28] sm:$0xf]
          %v634 = vld [vmem:[%s0 + $0x2c] sm:$0xf]
          %v635 = vld [vmem:[%s0 + $0x30] sm:$0xf]
          %v636 = vld [vmem:[%s0 + $0x34] sm:$0xf]
          %v637 = vld [vmem:[%s0 + $0x38] sm:$0xf]
          %v638 = vld [vmem:[%s0 + $0x3c] sm:$0xf]
          %v639 = vld [vmem:[%s416] sm:$0x1]
          %v641 = vlaneseq
          %v642 = vshrl.u32 %v641, 7
          %v643 = vsub.s32 0, %v642
          %v644 = vrot.slane %v639, %v643
          %v662 = vunpack.c.l.b16 %v623
          %v663 = vunpack.c.l.b16 %v624
          %v664 = vunpack.c.l.b16 %v625
          %v665 = vunpack.c.l.b16 %v626
          %v666 = vunpack.c.l.b16 %v627
          %v667 = vunpack.c.l.b16 %v628
          %v668 = vunpack.c.l.b16 %v629
          %v669 = vunpack.c.l.b16 %v630
          %v670 = vunpack.c.l.b16 %v631
          %v671 = vunpack.c.l.b16 %v632
          %v672 = vunpack.c.l.b16 %v633
          %v673 = vunpack.c.l.b16 %v634
          %v674 = vunpack.c.l.b16 %v635
          %v675 = vunpack.c.l.b16 %v636
          %v676 = vunpack.c.l.b16 %v637
          %v677 = vunpack.c.l.b16 %v638
          %v678 = vpack.c.b16 %v663, %v662
          %v679 = vpack.c.b16 %v665, %v664
          %v680 = vpack.c.b16 %v667, %v666
          %v681 = vpack.c.b16 %v669, %v668
          %v682 = vpack.c.b16 %v671, %v670
          %v683 = vpack.c.b16 %v673, %v672
          %v684 = vpack.c.b16 %v675, %v674
          %v685 = vpack.c.b16 %v677, %v676
          %694 = vmatprep.subr.bf16.mxu0 0
          %695 = vmatpush1.bf16.msra.mxu0 %v622
          %696 = vmatprep.subr.bf16.mxu0 0
          %697 = vmatpush1.bf16.msra.mxu0 %v621
          %698 = vmatprep.subr.bf16.mxu0 0
          %699 = vmatpush1.bf16.msra.mxu0 %v620
          %700 = vmatprep.subr.bf16.mxu0 0
          %701 = vmatpush1.bf16.msra.mxu0 %v619
          %702 = vmatprep.subr.bf16.mxu0 0
          %703 = vmatpush1.bf16.msra.mxu0 %v618
          %704 = vmatprep.subr.bf16.mxu0 0
          %705 = vmatpush1.bf16.msra.mxu0 %v617
          %706 = vmatprep.subr.bf16.mxu0 0
          %707 = vmatpush1.bf16.msra.mxu0 %v616
          %708 = vmatprep.subr.bf16.mxu0 0
          %709 = vmatpush1.bf16.msra.mxu0 %v615
          %710 = vmatprep.subr.bf16.mxu0 0
          %711 = vmatpush2.bf16.msra.mxu0 0
          %712 = vmatprep.subr.bf16.mxu0 0
          %713 = vmatpush2.bf16.msra.mxu0 0
          %714 = vmatprep.subr.bf16.mxu0 0
          %715 = vmatpush2.bf16.msra.mxu0 0
          %716 = vmatprep.subr.bf16.mxu0 0
          %717 = vmatpush2.bf16.msra.mxu0 0
          %718 = vmatprep.subr.bf16.mxu0 0
          %719 = vmatpush2.bf16.msra.mxu0 0
          %720 = vmatprep.subr.bf16.mxu0 0
          %721 = vmatpush2.bf16.msra.mxu0 0
          %722 = vmatprep.subr.bf16.mxu0 0
          %723 = vmatpush2.bf16.msra.mxu0 0
          %724 = vmatprep.subr.bf16.mxu0 0
          %725 = vmatpush2.bf16.msra.mxu0 0
          %726 = vmatprep.mubr.bf16.mxu0 0
          %727 = vmatmul.mubr.bf16.gmra.mxu0 %v678
          %v728 = vpop.f32.mrf.mxu0
          %v729 = vadd.f32 %v644, %v728
          %v730 = vpop.f32.mrf.mxu0
          %v731 = vpop.f32.mrf.mxu0
          %v732 = vadd.f32 %v644, %v731
          %v733 = vpop.f32.mrf.mxu0
          %734 = vmatprep.mubr.bf16.mxu0 0
          %735 = vmatmul.mubr.bf16.gmra.mxu0 %v679
          %v736 = vpop.f32.mrf.mxu0
          %v737 = vadd.f32 %v644, %v736
          %v738 = vpop.f32.mrf.mxu0
          %v739 = vpop.f32.mrf.mxu0
          %v740 = vadd.f32 %v644, %v739
          %v741 = vpop.f32.mrf.mxu0
          %742 = vmatprep.mubr.bf16.mxu0 0
          %743 = vmatmul.mubr.bf16.gmra.mxu0 %v680
          %v744 = vpop.f32.mrf.mxu0
          %v745 = vadd.f32 %v644, %v744
          %v746 = vpop.f32.mrf.mxu0
          %v747 = vpop.f32.mrf.mxu0
          %v748 = vadd.f32 %v644, %v747
          %v749 = vpop.f32.mrf.mxu0
          %750 = vmatprep.mubr.bf16.mxu0 0
          %751 = vmatmul.mubr.bf16.gmra.mxu0 %v681
          %v752 = vpop.f32.mrf.mxu0
          %v753 = vadd.f32 %v644, %v752
          %v754 = vpop.f32.mrf.mxu0
          %v755 = vpop.f32.mrf.mxu0
          %v756 = vadd.f32 %v644, %v755
          %v757 = vpop.f32.mrf.mxu0
          %758 = vmatprep.mubr.bf16.mxu0 0
          %759 = vmatmul.mubr.bf16.gmra.mxu0 %v682
          %v760 = vpop.f32.mrf.mxu0
          %v761 = vadd.f32 %v644, %v760
          %v762 = vpop.f32.mrf.mxu0
          %v763 = vpop.f32.mrf.mxu0
          %v764 = vadd.f32 %v644, %v763
          %v765 = vpop.f32.mrf.mxu0
          %766 = vmatprep.mubr.bf16.mxu0 0
          %767 = vmatmul.mubr.bf16.gmra.mxu0 %v683
          %v768 = vpop.f32.mrf.mxu0
          %v769 = vadd.f32 %v644, %v768
          %v770 = vpop.f32.mrf.mxu0
          %v771 = vpop.f32.mrf.mxu0
          %v772 = vadd.f32 %v644, %v771
          %v773 = vpop.f32.mrf.mxu0
          %774 = vmatprep.mubr.bf16.mxu0 0
          %775 = vmatmul.mubr.bf16.gmra.mxu0 %v684
          %v776 = vpop.f32.mrf.mxu0
          %v777 = vadd.f32 %v644, %v776
          %v778 = vpop.f32.mrf.mxu0
          %v779 = vpop.f32.mrf.mxu0
          %v780 = vadd.f32 %v644, %v779
          %v781 = vpop.f32.mrf.mxu0
          %782 = vmatprep.mubr.bf16.mxu0 0
          %783 = vmatmul.mubr.bf16.gmra.mxu0 %v685
          %v784 = vpop.f32.mrf.mxu0
          %v785 = vadd.f32 %v644, %v784
          %v786 = vpop.f32.mrf.mxu0
          %v787 = vpop.f32.mrf.mxu0
          %v788 = vadd.f32 %v644, %v787
          %v789 = vpop.f32.mrf.mxu0
          %790 = vdwg.mxu0
          %v791 = vmax.f32 %v729, 0.0
          %v792 = vmax.f32 %v732, 0.0
          %v793 = vmax.f32 %v737, 0.0
          %v794 = vmax.f32 %v740, 0.0
          %v795 = vmax.f32 %v745, 0.0
          %v796 = vmax.f32 %v748, 0.0
          %v797 = vmax.f32 %v753, 0.0
          %v798 = vmax.f32 %v756, 0.0
          %v799 = vmax.f32 %v761, 0.0
          %v800 = vmax.f32 %v764, 0.0
          %v801 = vmax.f32 %v769, 0.0
          %v802 = vmax.f32 %v772, 0.0
          %v803 = vmax.f32 %v777, 0.0
          %v804 = vmax.f32 %v780, 0.0
          %v805 = vmax.f32 %v785, 0.0
          %v806 = vmax.f32 %v788, 0.0
          %v807 = vpack.c.bf16 %v792, %v791
          %v808 = vpack.c.bf16 %v794, %v793
          %v809 = vpack.c.bf16 %v796, %v795
          %v810 = vpack.c.bf16 %v798, %v797
          %v811 = vpack.c.bf16 %v800, %v799
          %v812 = vpack.c.bf16 %v802, %v801
          %v813 = vpack.c.bf16 %v804, %v803
          %v814 = vpack.c.bf16 %v806, %v805
          %v823 = vunpack.c.l.b16 %v807
          %v824 = vunpack.c.h.b16 %v807
          %v825 = vunpack.c.l.b16 %v808
          %v826 = vunpack.c.h.b16 %v808
          %v827 = vunpack.c.l.b16 %v809
          %v828 = vunpack.c.h.b16 %v809
          %v829 = vunpack.c.l.b16 %v810
          %v830 = vunpack.c.h.b16 %v810
          %v831 = vunpack.c.l.b16 %v811
          %v832 = vunpack.c.h.b16 %v811
          %v833 = vunpack.c.l.b16 %v812
          %v834 = vunpack.c.h.b16 %v812
          %v835 = vunpack.c.l.b16 %v813
          %v836 = vunpack.c.h.b16 %v813
          %v837 = vunpack.c.l.b16 %v814
          %v838 = vunpack.c.h.b16 %v814
          %v839 = vpack.c.b16 %v823, %v823
          %v840 = vpack.c.b16 %v824, %v824
          %v841 = vpack.c.b16 %v825, %v825
          %v842 = vpack.c.b16 %v826, %v826
          %v843 = vpack.c.b16 %v827, %v827
          %v844 = vpack.c.b16 %v828, %v828
          %v845 = vpack.c.b16 %v829, %v829
          %v846 = vpack.c.b16 %v830, %v830
          %v847 = vpack.c.b16 %v831, %v831
          %v848 = vpack.c.b16 %v832, %v832
          %v849 = vpack.c.b16 %v833, %v833
          %v850 = vpack.c.b16 %v834, %v834
          %v851 = vpack.c.b16 %v835, %v835
          %v852 = vpack.c.b16 %v836, %v836
          %v853 = vpack.c.b16 %v837, %v837
          %v854 = vpack.c.b16 %v838, %v838
          %vm871 = vcmask 257024
          %872 = vst.msk [vmem:[#allocation2] sm:$0xf] %vm871, %v839
          %873 = vst.msk [vmem:[#allocation2 + $0x4] sm:$0xf] %vm871, %v840
          %874 = vst.msk [vmem:[#allocation2 + $0x8] sm:$0xf] %vm871, %v841
          %875 = vst.msk [vmem:[#allocation2 + $0xc] sm:$0xf] %vm871, %v842
          %876 = vst.msk [vmem:[#allocation2 + $0x10] sm:$0xf] %vm871, %v843
          %877 = vst.msk [vmem:[#allocation2 + $0x14] sm:$0xf] %vm871, %v844
          %878 = vst.msk [vmem:[#allocation2 + $0x18] sm:$0xf] %vm871, %v845
          %879 = vst.msk [vmem:[#allocation2 + $0x1c] sm:$0xf] %vm871, %v846
          %880 = vst.msk [vmem:[#allocation2 + $0x20] sm:$0xf] %vm871, %v847
          %881 = vst.msk [vmem:[#allocation2 + $0x24] sm:$0xf] %vm871, %v848
          %882 = vst.msk [vmem:[#allocation2 + $0x28] sm:$0xf] %vm871, %v849
          %883 = vst.msk [vmem:[#allocation2 + $0x2c] sm:$0xf] %vm871, %v850
          %884 = vst.msk [vmem:[#allocation2 + $0x30] sm:$0xf] %vm871, %v851
          %885 = vst.msk [vmem:[#allocation2 + $0x34] sm:$0xf] %vm871, %v852
          %886 = vst.msk [vmem:[#allocation2 + $0x38] sm:$0xf] %vm871, %v853
          %887 = vst.msk [vmem:[#allocation2 + $0x3c] sm:$0xf] %vm871, %v854
        $region76: #{tpu_custom_call.1} parent=63 // pred_fallthru
          _
        %p888 = scmp.gt.s32.totalorder %s25, 0
        // Predicated region
        $region77: #{tpu_custom_call.1} parent=63 // pred_check
          %p889 = pneg %p888
        $region78: #{tpu_custom_call.1} parent=63 // pred_check_branch
          %891 = sbr.rel (%p889) target = $region80
        $region79: #{tpu_custom_call.1} parent=63 // pred_region
          %v892 = vld [vmem:[#allocation2] sm:$0xf]
          %v893 = vld [vmem:[#allocation2 + $0x4] sm:$0xf]
          %v894 = vld [vmem:[#allocation2 + $0x8] sm:$0xf]
          %v895 = vld [vmem:[#allocation2 + $0xc] sm:$0xf]
          %v896 = vld [vmem:[#allocation2 + $0x10] sm:$0xf]
          %v897 = vld [vmem:[#allocation2 + $0x14] sm:$0xf]
          %v898 = vld [vmem:[#allocation2 + $0x18] sm:$0xf]
          %v899 = vld [vmem:[#allocation2 + $0x1c] sm:$0xf]
          %v900 = vld [vmem:[#allocation2 + $0x20] sm:$0xf]
          %v901 = vld [vmem:[#allocation2 + $0x24] sm:$0xf]
          %v902 = vld [vmem:[#allocation2 + $0x28] sm:$0xf]
          %v903 = vld [vmem:[#allocation2 + $0x2c] sm:$0xf]
          %v904 = vld [vmem:[#allocation2 + $0x30] sm:$0xf]
          %v905 = vld [vmem:[#allocation2 + $0x34] sm:$0xf]
          %v906 = vld [vmem:[#allocation2 + $0x38] sm:$0xf]
          %v907 = vld [vmem:[#allocation2 + $0x3c] sm:$0xf]
          %v908 = vld [vmem:[%s413] sm:$0xf]
          %v909 = vld [vmem:[%s413 + $0x4] sm:$0xf]
          %v910 = vld [vmem:[%s413 + $0x8] sm:$0xf]
          %v911 = vld [vmem:[%s413 + $0xc] sm:$0xf]
          %v928 = vunpack.c.l.b16 %v892
          %v929 = vunpack.c.l.b16 %v893
          %v930 = vunpack.c.l.b16 %v894
          %v931 = vunpack.c.l.b16 %v895
          %v932 = vunpack.c.l.b16 %v896
          %v933 = vunpack.c.l.b16 %v897
          %v934 = vunpack.c.l.b16 %v898
          %v935 = vunpack.c.l.b16 %v899
          %v936 = vunpack.c.l.b16 %v900
          %v937 = vunpack.c.l.b16 %v901
          %v938 = vunpack.c.l.b16 %v902
          %v939 = vunpack.c.l.b16 %v903
          %v940 = vunpack.c.l.b16 %v904
          %v941 = vunpack.c.l.b16 %v905
          %v942 = vunpack.c.l.b16 %v906
          %v943 = vunpack.c.l.b16 %v907
          %v944 = vpack.c.b16 %v929, %v928
          %v945 = vpack.c.b16 %v931, %v930
          %v946 = vpack.c.b16 %v933, %v932
          %v947 = vpack.c.b16 %v935, %v934
          %v948 = vpack.c.b16 %v937, %v936
          %v949 = vpack.c.b16 %v939, %v938
          %v950 = vpack.c.b16 %v941, %v940
          %v951 = vpack.c.b16 %v943, %v942
          %v956 = vunpack.c.l.b16 %v908
          %v957 = vunpack.c.l.b16 %v909
          %v958 = vunpack.c.l.b16 %v910
          %v959 = vunpack.c.l.b16 %v911
          %v960 = vpack.c.b16 %v957, %v956
          %v961 = vpack.c.b16 %v959, %v958
          %vm964 = vcmask 261120
          %v966 = vsel %vm964, %v944, 0
          %v969 = vsel %vm964, %v945, 0
          %v972 = vsel %vm964, %v946, 0
          %v975 = vsel %vm964, %v947, 0
          %v978 = vsel %vm964, %v948, 0
          %v981 = vsel %vm964, %v949, 0
          %v984 = vsel %vm964, %v950, 0
          %v987 = vsel %vm964, %v951, 0
          %989 = vmatprep.subr.bf16.mxu0 0
          %990 = vmatpush1.bf16.msra.mxu0 0
          %991 = vmatprep.subr.bf16.mxu0 0
          %992 = vmatpush1.bf16.msra.mxu0 0
          %993 = vmatprep.subr.bf16.mxu0 0
          %994 = vmatpush1.bf16.msra.mxu0 0
          %995 = vmatprep.subr.bf16.mxu0 0
          %996 = vmatpush1.bf16.msra.mxu0 0
          %997 = vmatprep.subr.bf16.mxu0 0
          %998 = vmatpush1.bf16.msra.mxu0 0
          %999 = vmatprep.subr.bf16.mxu0 0
          %1000 = vmatpush1.bf16.msra.mxu0 0
          %1001 = vmatprep.subr.bf16.mxu0 0
          %1002 = vmatpush1.bf16.msra.mxu0 %v961
          %1003 = vmatprep.subr.bf16.mxu0 0
          %1004 = vmatpush1.bf16.msra.mxu0 %v960
          %1005 = vmatprep.subr.bf16.mxu0 0
          %1006 = vmatpush2.bf16.msra.mxu0 0
          %1007 = vmatprep.subr.bf16.mxu0 0
          %1008 = vmatpush2.bf16.msra.mxu0 0
          %1009 = vmatprep.subr.bf16.mxu0 0
          %1010 = vmatpush2.bf16.msra.mxu0 0
          %1011 = vmatprep.subr.bf16.mxu0 0
          %1012 = vmatpush2.bf16.msra.mxu0 0
          %1013 = vmatprep.subr.bf16.mxu0 0
          %1014 = vmatpush2.bf16.msra.mxu0 0
          %1015 = vmatprep.subr.bf16.mxu0 0
          %1016 = vmatpush2.bf16.msra.mxu0 0
          %1017 = vmatprep.subr.bf16.mxu0 0
          %1018 = vmatpush2.bf16.msra.mxu0 0
          %1019 = vmatprep.subr.bf16.mxu0 0
          %1020 = vmatpush2.bf16.msra.mxu0 0
          %1021 = vmatprep.mubr.bf16.mxu0 0
          %1022 = vmatmul.mubr.bf16.gmra.mxu0 %v966
          %v1023 = vpop.f32.mrf.mxu0
          %v1024 = vadd.f32 0.0, %v1023
          %v1025 = vpop.f32.mrf.mxu0
          %v1026 = vpop.f32.mrf.mxu0
          %v1027 = vadd.f32 0.0, %v1026
          %v1028 = vpop.f32.mrf.mxu0
          %1029 = vmatprep.mubr.bf16.mxu0 0
          %1030 = vmatmul.mubr.bf16.gmra.mxu0 %v969
          %v1031 = vpop.f32.mrf.mxu0
          %v1032 = vadd.f32 0.0, %v1031
          %v1033 = vpop.f32.mrf.mxu0
          %v1034 = vpop.f32.mrf.mxu0
          %v1035 = vadd.f32 0.0, %v1034
          %v1036 = vpop.f32.mrf.mxu0
          %1037 = vmatprep.mubr.bf16.mxu0 0
          %1038 = vmatmul.mubr.bf16.gmra.mxu0 %v972
          %v1039 = vpop.f32.mrf.mxu0
          %v1040 = vadd.f32 0.0, %v1039
          %v1041 = vpop.f32.mrf.mxu0
          %v1042 = vpop.f32.mrf.mxu0
          %v1043 = vadd.f32 0.0, %v1042
          %v1044 = vpop.f32.mrf.mxu0
          %1045 = vmatprep.mubr.bf16.mxu0 0
          %1046 = vmatmul.mubr.bf16.gmra.mxu0 %v975
          %v1047 = vpop.f32.mrf.mxu0
          %v1048 = vadd.f32 0.0, %v1047
          %v1049 = vpop.f32.mrf.mxu0
          %v1050 = vpop.f32.mrf.mxu0
          %v1051 = vadd.f32 0.0, %v1050
          %v1052 = vpop.f32.mrf.mxu0
          %1053 = vmatprep.mubr.bf16.mxu0 0
          %1054 = vmatmul.mubr.bf16.gmra.mxu0 %v978
          %v1055 = vpop.f32.mrf.mxu0
          %v1056 = vadd.f32 0.0, %v1055
          %v1057 = vpop.f32.mrf.mxu0
          %v1058 = vpop.f32.mrf.mxu0
          %v1059 = vadd.f32 0.0, %v1058
          %v1060 = vpop.f32.mrf.mxu0
          %1061 = vmatprep.mubr.bf16.mxu0 0
          %1062 = vmatmul.mubr.bf16.gmra.mxu0 %v981
          %v1063 = vpop.f32.mrf.mxu0
          %v1064 = vadd.f32 0.0, %v1063
          %v1065 = vpop.f32.mrf.mxu0
          %v1066 = vpop.f32.mrf.mxu0
          %v1067 = vadd.f32 0.0, %v1066
          %v1068 = vpop.f32.mrf.mxu0
          %1069 = vmatprep.mubr.bf16.mxu0 0
          %1070 = vmatmul.mubr.bf16.gmra.mxu0 %v984
          %v1071 = vpop.f32.mrf.mxu0
          %v1072 = vadd.f32 0.0, %v1071
          %v1073 = vpop.f32.mrf.mxu0
          %v1074 = vpop.f32.mrf.mxu0
          %v1075 = vadd.f32 0.0, %v1074
          %v1076 = vpop.f32.mrf.mxu0
          %1077 = vmatprep.mubr.bf16.mxu0 0
          %1078 = vmatmul.mubr.bf16.gmra.mxu0 %v987
          %v1079 = vpop.f32.mrf.mxu0
          %v1080 = vadd.f32 0.0, %v1079
          %v1081 = vpop.f32.mrf.mxu0
          %v1082 = vpop.f32.mrf.mxu0
          %v1083 = vadd.f32 0.0, %v1082
          %v1084 = vpop.f32.mrf.mxu0
          %1085 = vdwg.mxu0
          %v1086 = vpack.c.bf16 %v1027, %v1024
          %v1087 = vpack.c.bf16 %v1035, %v1032
          %v1088 = vpack.c.bf16 %v1043, %v1040
          %v1089 = vpack.c.bf16 %v1051, %v1048
          %v1090 = vpack.c.bf16 %v1059, %v1056
          %v1091 = vpack.c.bf16 %v1067, %v1064
          %v1092 = vpack.c.bf16 %v1075, %v1072
          %v1093 = vpack.c.bf16 %v1083, %v1080
          %v1094 = vld [vmem:[%s0] sm:$0xf]
          %v1095 = vld [vmem:[%s0 + $0x4] sm:$0xf]
          %v1096 = vld [vmem:[%s0 + $0x8] sm:$0xf]
          %v1097 = vld [vmem:[%s0 + $0xc] sm:$0xf]
          %v1098 = vld [vmem:[%s0 + $0x10] sm:$0xf]
          %v1099 = vld [vmem:[%s0 + $0x14] sm:$0xf]
          %v1100 = vld [vmem:[%s0 + $0x18] sm:$0xf]
          %v1101 = vld [vmem:[%s0 + $0x1c] sm:$0xf]
          %v1102 = vld [vmem:[%s0 + $0x20] sm:$0xf]
          %v1103 = vld [vmem:[%s0 + $0x24] sm:$0xf]
          %v1104 = vld [vmem:[%s0 + $0x28] sm:$0xf]
          %v1105 = vld [vmem:[%s0 + $0x2c] sm:$0xf]
          %v1106 = vld [vmem:[%s0 + $0x30] sm:$0xf]
          %v1107 = vld [vmem:[%s0 + $0x34] sm:$0xf]
          %v1108 = vld [vmem:[%s0 + $0x38] sm:$0xf]
          %v1109 = vld [vmem:[%s0 + $0x3c] sm:$0xf]
          %v1110 = vld [vmem:[%s416] sm:$0x1]
          %v1112 = vlaneseq
          %v1113 = vshrl.u32 %v1112, 7
          %v1114 = vsub.s32 0, %v1113
          %v1115 = vrot.slane %v1110, %v1114
          %v1133 = vunpack.c.l.b16 %v1094
          %v1134 = vunpack.c.l.b16 %v1095
          %v1135 = vunpack.c.l.b16 %v1096
          %v1136 = vunpack.c.l.b16 %v1097
          %v1137 = vunpack.c.l.b16 %v1098
          %v1138 = vunpack.c.l.b16 %v1099
          %v1139 = vunpack.c.l.b16 %v1100
          %v1140 = vunpack.c.l.b16 %v1101
          %v1141 = vunpack.c.l.b16 %v1102
          %v1142 = vunpack.c.l.b16 %v1103
          %v1143 = vunpack.c.l.b16 %v1104
          %v1144 = vunpack.c.l.b16 %v1105
          %v1145 = vunpack.c.l.b16 %v1106
          %v1146 = vunpack.c.l.b16 %v1107
          %v1147 = vunpack.c.l.b16 %v1108
          %v1148 = vunpack.c.l.b16 %v1109
          %v1149 = vpack.c.b16 %v1134, %v1133
          %v1150 = vpack.c.b16 %v1136, %v1135
          %v1151 = vpack.c.b16 %v1138, %v1137
          %v1152 = vpack.c.b16 %v1140, %v1139
          %v1153 = vpack.c.b16 %v1142, %v1141
          %v1154 = vpack.c.b16 %v1144, %v1143
          %v1155 = vpack.c.b16 %v1146, %v1145
          %v1156 = vpack.c.b16 %v1148, %v1147
          %1165 = vmatprep.subr.bf16.mxu0 0
          %1166 = vmatpush1.bf16.msra.mxu0 %v1093
          %1167 = vmatprep.subr.bf16.mxu0 0
          %1168 = vmatpush1.bf16.msra.mxu0 %v1092
          %1169 = vmatprep.subr.bf16.mxu0 0
          %1170 = vmatpush1.bf16.msra.mxu0 %v1091
          %1171 = vmatprep.subr.bf16.mxu0 0
          %1172 = vmatpush1.bf16.msra.mxu0 %v1090
          %1173 = vmatprep.subr.bf16.mxu0 0
          %1174 = vmatpush1.bf16.msra.mxu0 %v1089
          %1175 = vmatprep.subr.bf16.mxu0 0
          %1176 = vmatpush1.bf16.msra.mxu0 %v1088
          %1177 = vmatprep.subr.bf16.mxu0 0
          %1178 = vmatpush1.bf16.msra.mxu0 %v1087
          %1179 = vmatprep.subr.bf16.mxu0 0
          %1180 = vmatpush1.bf16.msra.mxu0 %v1086
          %1181 = vmatprep.subr.bf16.mxu0 0
          %1182 = vmatpush2.bf16.msra.mxu0 0
          %1183 = vmatprep.subr.bf16.mxu0 0
          %1184 = vmatpush2.bf16.msra.mxu0 0
          %1185 = vmatprep.subr.bf16.mxu0 0
          %1186 = vmatpush2.bf16.msra.mxu0 0
          %1187 = vmatprep.subr.bf16.mxu0 0
          %1188 = vmatpush2.bf16.msra.mxu0 0
          %1189 = vmatprep.subr.bf16.mxu0 0
          %1190 = vmatpush2.bf16.msra.mxu0 0
          %1191 = vmatprep.subr.bf16.mxu0 0
          %1192 = vmatpush2.bf16.msra.mxu0 0
          %1193 = vmatprep.subr.bf16.mxu0 0
          %1194 = vmatpush2.bf16.msra.mxu0 0
          %1195 = vmatprep.subr.bf16.mxu0 0
          %1196 = vmatpush2.bf16.msra.mxu0 0
          %1197 = vmatprep.mubr.bf16.mxu0 0
          %1198 = vmatmul.mubr.bf16.gmra.mxu0 %v1149
          %v1199 = vpop.f32.mrf.mxu0
          %v1200 = vadd.f32 %v1115, %v1199
          %v1201 = vpop.f32.mrf.mxu0
          %v1202 = vpop.f32.mrf.mxu0
          %v1203 = vadd.f32 %v1115, %v1202
          %v1204 = vpop.f32.mrf.mxu0
          %1205 = vmatprep.mubr.bf16.mxu0 0
          %1206 = vmatmul.mubr.bf16.gmra.mxu0 %v1150
          %v1207 = vpop.f32.mrf.mxu0
          %v1208 = vadd.f32 %v1115, %v1207
          %v1209 = vpop.f32.mrf.mxu0
          %v1210 = vpop.f32.mrf.mxu0
          %v1211 = vadd.f32 %v1115, %v1210
          %v1212 = vpop.f32.mrf.mxu0
          %1213 = vmatprep.mubr.bf16.mxu0 0
          %1214 = vmatmul.mubr.bf16.gmra.mxu0 %v1151
          %v1215 = vpop.f32.mrf.mxu0
          %v1216 = vadd.f32 %v1115, %v1215
          %v1217 = vpop.f32.mrf.mxu0
          %v1218 = vpop.f32.mrf.mxu0
          %v1219 = vadd.f32 %v1115, %v1218
          %v1220 = vpop.f32.mrf.mxu0
          %1221 = vmatprep.mubr.bf16.mxu0 0
          %1222 = vmatmul.mubr.bf16.gmra.mxu0 %v1152
          %v1223 = vpop.f32.mrf.mxu0
          %v1224 = vadd.f32 %v1115, %v1223
          %v1225 = vpop.f32.mrf.mxu0
          %v1226 = vpop.f32.mrf.mxu0
          %v1227 = vadd.f32 %v1115, %v1226
          %v1228 = vpop.f32.mrf.mxu0
          %1229 = vmatprep.mubr.bf16.mxu0 0
          %1230 = vmatmul.mubr.bf16.gmra.mxu0 %v1153
          %v1231 = vpop.f32.mrf.mxu0
          %v1232 = vadd.f32 %v1115, %v1231
          %v1233 = vpop.f32.mrf.mxu0
          %v1234 = vpop.f32.mrf.mxu0
          %v1235 = vadd.f32 %v1115, %v1234
          %v1236 = vpop.f32.mrf.mxu0
          %1237 = vmatprep.mubr.bf16.mxu0 0
          %1238 = vmatmul.mubr.bf16.gmra.mxu0 %v1154
          %v1239 = vpop.f32.mrf.mxu0
          %v1240 = vadd.f32 %v1115, %v1239
          %v1241 = vpop.f32.mrf.mxu0
          %v1242 = vpop.f32.mrf.mxu0
          %v1243 = vadd.f32 %v1115, %v1242
          %v1244 = vpop.f32.mrf.mxu0
          %1245 = vmatprep.mubr.bf16.mxu0 0
          %1246 = vmatmul.mubr.bf16.gmra.mxu0 %v1155
          %v1247 = vpop.f32.mrf.mxu0
          %v1248 = vadd.f32 %v1115, %v1247
          %v1249 = vpop.f32.mrf.mxu0
          %v1250 = vpop.f32.mrf.mxu0
          %v1251 = vadd.f32 %v1115, %v1250
          %v1252 = vpop.f32.mrf.mxu0
          %1253 = vmatprep.mubr.bf16.mxu0 0
          %1254 = vmatmul.mubr.bf16.gmra.mxu0 %v1156
          %v1255 = vpop.f32.mrf.mxu0
          %v1256 = vadd.f32 %v1115, %v1255
          %v1257 = vpop.f32.mrf.mxu0
          %v1258 = vpop.f32.mrf.mxu0
          %v1259 = vadd.f32 %v1115, %v1258
          %v1260 = vpop.f32.mrf.mxu0
          %1261 = vdwg.mxu0
          %v1262 = vmax.f32 %v1200, 0.0
          %v1263 = vmax.f32 %v1203, 0.0
          %v1264 = vmax.f32 %v1208, 0.0
          %v1265 = vmax.f32 %v1211, 0.0
          %v1266 = vmax.f32 %v1216, 0.0
          %v1267 = vmax.f32 %v1219, 0.0
          %v1268 = vmax.f32 %v1224, 0.0
          %v1269 = vmax.f32 %v1227, 0.0
          %v1270 = vmax.f32 %v1232, 0.0
          %v1271 = vmax.f32 %v1235, 0.0
          %v1272 = vmax.f32 %v1240, 0.0
          %v1273 = vmax.f32 %v1243, 0.0
          %v1274 = vmax.f32 %v1248, 0.0
          %v1275 = vmax.f32 %v1251, 0.0
          %v1276 = vmax.f32 %v1256, 0.0
          %v1277 = vmax.f32 %v1259, 0.0
          %v1278 = vpack.c.bf16 %v1263, %v1262
          %v1279 = vpack.c.bf16 %v1265, %v1264
          %v1280 = vpack.c.bf16 %v1267, %v1266
          %v1281 = vpack.c.bf16 %v1269, %v1268
          %v1282 = vpack.c.bf16 %v1271, %v1270
          %v1283 = vpack.c.bf16 %v1273, %v1272
          %v1284 = vpack.c.bf16 %v1275, %v1274
          %v1285 = vpack.c.bf16 %v1277, %v1276
          %v1294 = vunpack.c.l.b16 %v1278
          %v1295 = vunpack.c.h.b16 %v1278
          %v1296 = vunpack.c.l.b16 %v1279
          %v1297 = vunpack.c.h.b16 %v1279
          %v1298 = vunpack.c.l.b16 %v1280
          %v1299 = vunpack.c.h.b16 %v1280
          %v1300 = vunpack.c.l.b16 %v1281
          %v1301 = vunpack.c.h.b16 %v1281
          %v1302 = vunpack.c.l.b16 %v1282
          %v1303 = vunpack.c.h.b16 %v1282
          %v1304 = vunpack.c.l.b16 %v1283
          %v1305 = vunpack.c.h.b16 %v1283
          %v1306 = vunpack.c.l.b16 %v1284
          %v1307 = vunpack.c.h.b16 %v1284
          %v1308 = vunpack.c.l.b16 %v1285
          %v1309 = vunpack.c.h.b16 %v1285
          %v1310 = vpack.c.b16 %v1294, %v1294
          %v1311 = vpack.c.b16 %v1295, %v1295
          %v1312 = vpack.c.b16 %v1296, %v1296
          %v1313 = vpack.c.b16 %v1297, %v1297
          %v1314 = vpack.c.b16 %v1298, %v1298
          %v1315 = vpack.c.b16 %v1299, %v1299
          %v1316 = vpack.c.b16 %v1300, %v1300
          %v1317 = vpack.c.b16 %v1301, %v1301
          %v1318 = vpack.c.b16 %v1302, %v1302
          %v1319 = vpack.c.b16 %v1303, %v1303
          %v1320 = vpack.c.b16 %v1304, %v1304
          %v1321 = vpack.c.b16 %v1305, %v1305
          %v1322 = vpack.c.b16 %v1306, %v1306
          %v1323 = vpack.c.b16 %v1307, %v1307
          %v1324 = vpack.c.b16 %v1308, %v1308
          %v1325 = vpack.c.b16 %v1309, %v1309
          %vm1342 = vcmask 257024
          %1343 = vst.msk [vmem:[#allocation2] sm:$0xf] %vm1342, %v1310
          %1344 = vst.msk [vmem:[#allocation2 + $0x4] sm:$0xf] %vm1342, %v1311
          %1345 = vst.msk [vmem:[#allocation2 + $0x8] sm:$0xf] %vm1342, %v1312
          %1346 = vst.msk [vmem:[#allocation2 + $0xc] sm:$0xf] %vm1342, %v1313
          %1347 = vst.msk [vmem:[#allocation2 + $0x10] sm:$0xf] %vm1342, %v1314
          %1348 = vst.msk [vmem:[#allocation2 + $0x14] sm:$0xf] %vm1342, %v1315
          %1349 = vst.msk [vmem:[#allocation2 + $0x18] sm:$0xf] %vm1342, %v1316
          %1350 = vst.msk [vmem:[#allocation2 + $0x1c] sm:$0xf] %vm1342, %v1317
          %1351 = vst.msk [vmem:[#allocation2 + $0x20] sm:$0xf] %vm1342, %v1318
          %1352 = vst.msk [vmem:[#allocation2 + $0x24] sm:$0xf] %vm1342, %v1319
          %1353 = vst.msk [vmem:[#allocation2 + $0x28] sm:$0xf] %vm1342, %v1320
          %1354 = vst.msk [vmem:[#allocation2 + $0x2c] sm:$0xf] %vm1342, %v1321
          %1355 = vst.msk [vmem:[#allocation2 + $0x30] sm:$0xf] %vm1342, %v1322
          %1356 = vst.msk [vmem:[#allocation2 + $0x34] sm:$0xf] %vm1342, %v1323
          %1357 = vst.msk [vmem:[#allocation2 + $0x38] sm:$0xf] %vm1342, %v1324
          %1358 = vst.msk [vmem:[#allocation2 + $0x3c] sm:$0xf] %vm1342, %v1325
        $region80: #{tpu_custom_call.1} parent=63 // pred_fallthru
          _
        %p1359 = scmp.eq.s32.totalorder %s25, 1
        // Predicated region
        $region81: #{tpu_custom_call.1} parent=63 // pred_check
          %p1360 = pneg %p1359
        $region82: #{tpu_custom_call.1} parent=63 // pred_check_branch
          %1362 = sbr.rel (%p1360) target = $region84
        $region83: #{tpu_custom_call.1} parent=63 // pred_region
          %v1363 = vld [vmem:[%s6] sm:$0x1]
          %v1364 = vld [vmem:[#allocation2] sm:$0xf]
          %v1365 = vld [vmem:[#allocation2 + $0x4] sm:$0xf]
          %v1366 = vld [vmem:[#allocation2 + $0x8] sm:$0xf]
          %v1367 = vld [vmem:[#allocation2 + $0xc] sm:$0xf]
          %v1368 = vld [vmem:[#allocation2 + $0x10] sm:$0xf]
          %v1369 = vld [vmem:[#allocation2 + $0x14] sm:$0xf]
          %v1370 = vld [vmem:[#allocation2 + $0x18] sm:$0xf]
          %v1371 = vld [vmem:[#allocation2 + $0x1c] sm:$0xf]
          %v1372 = vld [vmem:[#allocation2 + $0x20] sm:$0xf]
          %v1373 = vld [vmem:[#allocation2 + $0x24] sm:$0xf]
          %v1374 = vld [vmem:[#allocation2 + $0x28] sm:$0xf]
          %v1375 = vld [vmem:[#allocation2 + $0x2c] sm:$0xf]
          %v1376 = vld [vmem:[#allocation2 + $0x30] sm:$0xf]
          %v1377 = vld [vmem:[#allocation2 + $0x34] sm:$0xf]
          %v1378 = vld [vmem:[#allocation2 + $0x38] sm:$0xf]
          %v1379 = vld [vmem:[#allocation2 + $0x3c] sm:$0xf]
          %v1396 = vunpack.c.l.b16 %v1364
          %v1397 = vunpack.c.l.b16 %v1365
          %v1398 = vunpack.c.l.b16 %v1366
          %v1399 = vunpack.c.l.b16 %v1367
          %v1400 = vunpack.c.l.b16 %v1368
          %v1401 = vunpack.c.l.b16 %v1369
          %v1402 = vunpack.c.l.b16 %v1370
          %v1403 = vunpack.c.l.b16 %v1371
          %v1404 = vunpack.c.l.b16 %v1372
          %v1405 = vunpack.c.l.b16 %v1373
          %v1406 = vunpack.c.l.b16 %v1374
          %v1407 = vunpack.c.l.b16 %v1375
          %v1408 = vunpack.c.l.b16 %v1376
          %v1409 = vunpack.c.l.b16 %v1377
          %v1410 = vunpack.c.l.b16 %v1378
          %v1411 = vunpack.c.l.b16 %v1379
          %v1412 = vpack.c.b16 %v1397, %v1396
          %v1413 = vpack.c.b16 %v1399, %v1398
          %v1414 = vpack.c.b16 %v1401, %v1400
          %v1415 = vpack.c.b16 %v1403, %v1402
          %v1416 = vpack.c.b16 %v1405, %v1404
          %v1417 = vpack.c.b16 %v1407, %v1406
          %v1418 = vpack.c.b16 %v1409, %v1408
          %v1419 = vpack.c.b16 %v1411, %v1410
          %1428 = vmatprep.subr.bf16.mxu0 0
          %1429 = vmatpush1.bf16.msra.mxu0 %v1419
          %1430 = vmatprep.subr.bf16.mxu0 0
          %1431 = vmatpush1.bf16.msra.mxu0 %v1418
          %1432 = vmatprep.subr.bf16.mxu0 0
          %1433 = vmatpush1.bf16.msra.mxu0 %v1417
          %1434 = vmatprep.subr.bf16.mxu0 0
          %1435 = vmatpush1.bf16.msra.mxu0 %v1416
          %1436 = vmatprep.subr.bf16.mxu0 0
          %1437 = vmatpush1.bf16.msra.mxu0 %v1415
          %1438 = vmatprep.subr.bf16.mxu0 0
          %1439 = vmatpush1.bf16.msra.mxu0 %v1414
          %1440 = vmatprep.subr.bf16.mxu0 0
          %1441 = vmatpush1.bf16.msra.mxu0 %v1413
          %1442 = vmatprep.subr.bf16.mxu0 0
          %1443 = vmatpush1.bf16.msra.mxu0 %v1412
          %1444 = vmatprep.subr.bf16.mxu0 0
          %1445 = vmatpush2.bf16.msra.mxu0 0
          %1446 = vmatprep.subr.bf16.mxu0 0
          %1447 = vmatpush2.bf16.msra.mxu0 0
          %1448 = vmatprep.subr.bf16.mxu0 0
          %1449 = vmatpush2.bf16.msra.mxu0 0
          %1450 = vmatprep.subr.bf16.mxu0 0
          %1451 = vmatpush2.bf16.msra.mxu0 0
          %1452 = vmatprep.subr.bf16.mxu0 0
          %1453 = vmatpush2.bf16.msra.mxu0 0
          %1454 = vmatprep.subr.bf16.mxu0 0
          %1455 = vmatpush2.bf16.msra.mxu0 0
          %1456 = vmatprep.subr.bf16.mxu0 0
          %1457 = vmatpush2.bf16.msra.mxu0 0
          %1458 = vmatprep.subr.bf16.mxu0 0
          %1459 = vmatpush2.bf16.msra.mxu0 0
          %1460 = vmatprep.mubr.bf16.mxu0 0
          %1461 = vmatmul.mubr.bf16.gmra.mxu0 %v1363
          %v1462 = vpop.f32.mrf.mxu0
          %v1463 = vadd.f32 0.0, %v1462
          %v1464 = vpop.f32.mrf.mxu0
          %v1465 = vpop.f32.mrf.mxu0
          %v1466 = vpop.f32.mrf.mxu0
          %1467 = vdwg.mxu0
          %v1468 = vld [vmem:[#allocation6] sm:$0xff]
          %v1469 = vld [vmem:[#allocation6 + $0x8] sm:$0xff]
          %v1470 = vld [vmem:[#allocation6 + $0x10] sm:$0xff]
          %v1471 = vld [vmem:[#allocation6 + $0x18] sm:$0xff]
          %v1472 = vld [vmem:[%s8] sm:$0x1]
          %v1474 = vlaneseq
          %v1475 = vshrl.u32 %v1474, 7
          %v1476 = vsub.s32 0, %v1475
          %v1477 = vrot.slane %v1472, %v1476
          %vm1479 = vcmask 261120
          %v1481 = vsel %vm1479, %v1463, 0
          %1483 = vmatprep.subr.mxu0 0.0
          %1484 = vmatpush1.msra.mxu0 0.0
          %1485 = vmatprep.subr.mxu0 0.0
          %1486 = vmatpush1.msra.mxu0 0.0
          %1487 = vmatprep.subr.mxu0 0.0
          %1488 = vmatpush1.msra.mxu0 0.0
          %1489 = vmatprep.subr.mxu0 0.0
          %1490 = vmatpush1.msra.mxu0 0.0
          %1491 = vmatprep.subr.mxu0 0.0
          %1492 = vmatpush1.msra.mxu0 0.0
          %1493 = vmatprep.subr.mxu0 0.0
          %1494 = vmatpush1.msra.mxu0 0.0
          %1495 = vmatprep.subr.mxu0 0.0
          %1496 = vmatpush1.msra.mxu0 0.0
          %1497 = vmatprep.subr.mxu0 0.0
          %1498 = vmatpush1.msra.mxu0 0.0
          %1499 = vmatprep.subr.mxu0 0.0
          %1500 = vmatpush1.msra.mxu0 0.0
          %1501 = vmatprep.subr.mxu0 0.0
          %1502 = vmatpush1.msra.mxu0 0.0
          %1503 = vmatprep.subr.mxu0 0.0
          %1504 = vmatpush1.msra.mxu0 0.0
          %1505 = vmatprep.subr.mxu0 0.0
          %1506 = vmatpush1.msra.mxu0 0.0
          %1507 = vmatprep.subr.mxu0 0.0
          %1508 = vmatpush1.msra.mxu0 %v1471
          %1509 = vmatprep.subr.mxu0 0.0
          %1510 = vmatpush1.msra.mxu0 %v1470
          %1511 = vmatprep.subr.mxu0 0.0
          %1512 = vmatpush1.msra.mxu0 %v1469
          %1513 = vmatprep.subr.mxu0 0.0
          %1514 = vmatpush1.msra.mxu0 %v1468
          %1515 = vmatprep.subr.mxu0 0.0
          %1516 = vmatpush2.msra.mxu0 0.0
          %1517 = vmatprep.subr.mxu0 0.0
          %1518 = vmatpush2.msra.mxu0 0.0
          %1519 = vmatprep.subr.mxu0 0.0
          %1520 = vmatpush2.msra.mxu0 0.0
          %1521 = vmatprep.subr.mxu0 0.0
          %1522 = vmatpush2.msra.mxu0 0.0
          %1523 = vmatprep.subr.mxu0 0.0
          %1524 = vmatpush2.msra.mxu0 0.0
          %1525 = vmatprep.subr.mxu0 0.0
          %1526 = vmatpush2.msra.mxu0 0.0
          %1527 = vmatprep.subr.mxu0 0.0
          %1528 = vmatpush2.msra.mxu0 0.0
          %1529 = vmatprep.subr.mxu0 0.0
          %1530 = vmatpush2.msra.mxu0 0.0
          %1531 = vmatprep.subr.mxu0 0.0
          %1532 = vmatpush2.msra.mxu0 0.0
          %1533 = vmatprep.subr.mxu0 0.0
          %1534 = vmatpush2.msra.mxu0 0.0
          %1535 = vmatprep.subr.mxu0 0.0
          %1536 = vmatpush2.msra.mxu0 0.0
          %1537 = vmatprep.subr.mxu0 0.0
          %1538 = vmatpush2.msra.mxu0 0.0
          %1539 = vmatprep.subr.mxu0 0.0
          %1540 = vmatpush2.msra.mxu0 0.0
          %1541 = vmatprep.subr.mxu0 0.0
          %1542 = vmatpush2.msra.mxu0 0.0
          %1543 = vmatprep.subr.mxu0 0.0
          %1544 = vmatpush2.msra.mxu0 0.0
          %1545 = vmatprep.subr.mxu0 0.0
          %1546 = vmatpush2.msra.mxu0 0.0
          %1547 = vmatprep.mubr.f32.mxu0 0.0
          %1548 = vmatmul.mubr.f32.gmra.mxu0 %v1481
          %v1549 = vpop.f32.mrf.mxu0
          %v1550 = vadd.f32 %v1477, %v1549
          %v1551 = vpop.f32.mrf.mxu0
          %1552 = vdwg.mxu0
          %v1553 = vmax.f32 %v1550, 0.0
          %v1554 = vld [vmem:[%s9] sm:$0xff]
          %v1555 = vld [vmem:[%s9 + $0x8] sm:$0xff]
          %v1556 = vld [vmem:[%s9 + $0x10] sm:$0xff]
          %v1557 = vld [vmem:[%s9 + $0x18] sm:$0xff]
          %v1558 = vld [vmem:[%s10] sm:$0x1]
          %v1560 = vlaneseq
          %v1561 = vshrl.u32 %v1560, 7
          %v1562 = vsub.s32 0, %v1561
          %v1563 = vrot.slane %v1558, %v1562
          %v1566 = vsel %vm1479, %v1553, 0
          %1568 = vmatprep.subr.mxu0 0.0
          %1569 = vmatpush1.msra.mxu0 0.0
          %1570 = vmatprep.subr.mxu0 0.0
          %1571 = vmatpush1.msra.mxu0 0.0
          %1572 = vmatprep.subr.mxu0 0.0
          %1573 = vmatpush1.msra.mxu0 0.0
          %1574 = vmatprep.subr.mxu0 0.0
          %1575 = vmatpush1.msra.mxu0 0.0
          %1576 = vmatprep.subr.mxu0 0.0
          %1577 = vmatpush1.msra.mxu0 0.0
          %1578 = vmatprep.subr.mxu0 0.0
          %1579 = vmatpush1.msra.mxu0 0.0
          %1580 = vmatprep.subr.mxu0 0.0
          %1581 = vmatpush1.msra.mxu0 0.0
          %1582 = vmatprep.subr.mxu0 0.0
          %1583 = vmatpush1.msra.mxu0 0.0
          %1584 = vmatprep.subr.mxu0 0.0
          %1585 = vmatpush1.msra.mxu0 0.0
          %1586 = vmatprep.subr.mxu0 0.0
          %1587 = vmatpush1.msra.mxu0 0.0
          %1588 = vmatprep.subr.mxu0 0.0
          %1589 = vmatpush1.msra.mxu0 0.0
          %1590 = vmatprep.subr.mxu0 0.0
          %1591 = vmatpush1.msra.mxu0 0.0
          %1592 = vmatprep.subr.mxu0 0.0
          %1593 = vmatpush1.msra.mxu0 %v1557
          %1594 = vmatprep.subr.mxu0 0.0
          %1595 = vmatpush1.msra.mxu0 %v1556
          %1596 = vmatprep.subr.mxu0 0.0
          %1597 = vmatpush1.msra.mxu0 %v1555
          %1598 = vmatprep.subr.mxu0 0.0
          %1599 = vmatpush1.msra.mxu0 %v1554
          %1600 = vmatprep.subr.mxu0 0.0
          %1601 = vmatpush2.msra.mxu0 0.0
          %1602 = vmatprep.subr.mxu0 0.0
          %1603 = vmatpush2.msra.mxu0 0.0
          %1604 = vmatprep.subr.mxu0 0.0
          %1605 = vmatpush2.msra.mxu0 0.0
          %1606 = vmatprep.subr.mxu0 0.0
          %1607 = vmatpush2.msra.mxu0 0.0
          %1608 = vmatprep.subr.mxu0 0.0
          %1609 = vmatpush2.msra.mxu0 0.0
          %1610 = vmatprep.subr.mxu0 0.0
          %1611 = vmatpush2.msra.mxu0 0.0
          %1612 = vmatprep.subr.mxu0 0.0
          %1613 = vmatpush2.msra.mxu0 0.0
          %1614 = vmatprep.subr.mxu0 0.0
          %1615 = vmatpush2.msra.mxu0 0.0
          %1616 = vmatprep.subr.mxu0 0.0
          %1617 = vmatpush2.msra.mxu0 0.0
          %1618 = vmatprep.subr.mxu0 0.0
          %1619 = vmatpush2.msra.mxu0 0.0
          %1620 = vmatprep.subr.mxu0 0.0
          %1621 = vmatpush2.msra.mxu0 0.0
          %1622 = vmatprep.subr.mxu0 0.0
          %1623 = vmatpush2.msra.mxu0 0.0
          %1624 = vmatprep.subr.mxu0 0.0
          %1625 = vmatpush2.msra.mxu0 0.0
          %1626 = vmatprep.subr.mxu0 0.0
          %1627 = vmatpush2.msra.mxu0 0.0
          %1628 = vmatprep.subr.mxu0 0.0
          %1629 = vmatpush2.msra.mxu0 0.0
          %1630 = vmatprep.subr.mxu0 0.0
          %1631 = vmatpush2.msra.mxu0 0.0
          %1632 = vmatprep.mubr.f32.mxu0 0.0
          %1633 = vmatmul.mubr.f32.gmra.mxu0 %v1566
          %v1634 = vpop.f32.mrf.mxu0
          %v1635 = vadd.f32 %v1563, %v1634
          %v1636 = vpop.f32.mrf.mxu0
          %1637 = vdwg.mxu0
          %vm1638 = vcmask 25600
          %v1639 = vsel %vm1638, %v1635, -inf
          %1640 = vmax.xlane.f32.xlu0 %v1639
          %v1641 = vpop.xlane.xlu0 %1640
          %v1642 = vsub.f32 %v1635, %v1641
          %v1643 = vmul.f32 %v1642, 1.442695
          %v1644 = vpow.pop %v1643
          %v1645 = vsel %vm1638, %v1644, 0.0
          %1646 = vadd.xlane.f32.xlu0 %v1645
          %v1647 = vpop.xlane.xlu0 %1646
          %v1648 = vlog2.pop %v1647
          %v1649 = vmul.f32 %v1648, 0.6931472
          %v1650 = vsub.f32 %v1642, %v1649
          %1651 = vst.msk [vmem:[#allocation8] sm:$0x3] %vm1638, %v1650
        $region84: #{tpu_custom_call.1} parent=63 // pred_fallthru
          _
        // Predicated region
        $region85: #{tpu_custom_call.1} parent=63 // pred_check
          %p1652 = pneg %p279
        $region86: #{tpu_custom_call.1} parent=63 // pred_check_branch
          %1654 = sbr.rel (%p1652) target = $region88
        $region87: #{tpu_custom_call.1} parent=63 // pred_region
          %s1656 = ssub.s32 32, 32
          %1657 = vsyncadd [#allocation5], %s1656
          %s1659 = sshll.u32 [#allocation8], 4
          %s1660 = int_to_ptr.vmem [resolvable:$true] %s1659
          %1662 = dma.vmem_to_hbm [thread:$0]  %s1660, 32, %s11, [#allocation5]
        $region88: #{tpu_custom_call.1} parent=63 // pred_fallthru
          _
        // Predicated region
        $region89: #{tpu_custom_call.1} parent=63 // pred_check
          %p1663 = pneg %p279
        $region90: #{tpu_custom_call.1} parent=63 // pred_check_branch
          %1665 = sbr.rel (%p1663) target = $region92
        $region91: #{tpu_custom_call.1} parent=63 // pred_region
          %1666 = dma.done [#allocation5], 32
        $region92: #{tpu_custom_call.1} parent=63 // pred_fallthru
          _
      $region64: #{tpu_custom_call.1} parent=5 // pred_fallthru
        _
      %p1667 = scmp.le.s32.totalorder 2, %s20
      // Predicated region
      $region93: #{tpu_custom_call.1} parent=5 // pred_check
        %p1668 = pneg %p1667
      $region94: #{tpu_custom_call.1} parent=5 // pred_check_branch
        %1670 = sbr.rel (%p1668) target = $region96
      $region95: #{tpu_custom_call.1} parent=5 // pred_region
        %s1671 = ssub.s32 %s20, 2
      $region96: #{tpu_custom_call.1} parent=5 // pred_fallthru
        _
    $region6: #{tpu_custom_call.1} parent=1 // loop_footer
      %s24 = sadd.s32 1, %s20
    $region7: #{tpu_custom_call.1} parent=1 // loop_footer_branch
      %19 = sbr.rel target = $region3
    $region8: #{tpu_custom_call.1} parent=1 // loop_exit
      _
    %1672 = vsyncpa [#allocation4], 1
    %s1673 = scalar_lea.sflag [#allocation4], 1
    %1674 = vsyncpa %s1673, 1
    %1675 = vsyncpa [#allocation7], 1
    %1676 = vsyncpa [#allocation5], 1
    %s1677 = scalar_lea.sflag [#allocation5], 1
    %1678 = vsyncpa %s1677, 1

</llo_original>
